<compile_context>
chip_gen: v7x
topology: tpu7x:2x2x1
jax: 0.10.0
libtpu: 0.0.40
codegen_flags: <defaults>
</compile_context>

<pallas_src>
import functools

import jax
import jax.numpy as jnp
from jax import lax
from jax.experimental import pallas as pl
from jax.experimental.pallas import tpu as pltpu


def _layer_norm(x, gamma, beta, eps=1e-5):
    mu = jnp.mean(x, axis=-1, keepdims=True)
    xc = x - mu
    var = jnp.mean(xc * xc, axis=-1, keepdims=True)
    return xc * lax.rsqrt(var + eps) * gamma + beta


def mha_kernel(
    q_ref, k_ref, v_ref,                      # [L, D] f32 activations
    wq_ref, wk_ref, wv_ref, wf_ref,           # [D, D] bf16 (pre-transposed: y = x @ W)
    bq_ref, bk_ref, bv_ref, bf_ref,           # [1, D] f32
    gamma_ref, beta_ref,                      # [1, D] f32
    out_ref,                                  # [Lq, D] f32
    attn_ref,                                 # [H*Lq, Lk] f32 (head-major rows)
    *, num_heads, scale,
):
    f32 = jnp.float32
    bf16 = jnp.bfloat16
    lq, d = q_ref.shape
    dph = d // num_heads

    q_raw = q_ref[...]                         # residual (raw query input), f32
    q_bf = q_raw.astype(bf16)
    k_bf = k_ref[...].astype(bf16)
    v_bf = v_ref[...].astype(bf16)

    # --- Full-width projections: three [L,D]x[D,D] MXU dots, bf16 in / f32 acc.
    qp = jnp.dot(q_bf, wq_ref[...], preferred_element_type=f32) + bq_ref[...]
    kp = jnp.dot(k_bf, wk_ref[...], preferred_element_type=f32) + bk_ref[...]
    vp = jnp.dot(v_bf, wv_ref[...], preferred_element_type=f32) + bv_ref[...]
    qp_bf, kp_bf, vp_bf = qp.astype(bf16), kp.astype(bf16), vp.astype(bf16)

    # --- Per-head scores via static lane slices; k^T folded into the
    #     contraction (contract last dims), no transpose buffer.
    scores = []
    for h in range(num_heads):
        qh = qp_bf[:, h * dph:(h + 1) * dph]           # [Lq, dph]
        kh = kp_bf[:, h * dph:(h + 1) * dph]           # [Lk, dph]
        scores.append(lax.dot_general(
            qh, kh, dimension_numbers=(((1,), (1,)), ((), ())),
            preferred_element_type=f32))               # [Lq, Lk]
    s = jnp.concatenate(scores, axis=0) * scale        # [H*Lq, Lk]

    # --- One batched softmax over all heads (exact divide so returned
    #     attention rows sum to 1), single contiguous attn store.
    m = jnp.max(s, axis=-1, keepdims=True)
    e = jnp.exp(s - m)
    p = e / jnp.sum(e, axis=-1, keepdims=True)
    attn_ref[...] = p

    # --- Per-head context, lane-concatenated to [Lq, D] so linear_final is
    #     one full-width [Lq,D]x[D,D] dot.
    p_bf = p.astype(bf16)
    ctx_parts = []
    for h in range(num_heads):
        vh = vp_bf[:, h * dph:(h + 1) * dph]           # [Lk, dph]
        ph = p_bf[h * lq:(h + 1) * lq, :]              # [Lq, Lk]
        ctx_parts.append(jnp.dot(ph, vh, preferred_element_type=f32))
    ctx = jnp.concatenate(ctx_parts, axis=-1).astype(bf16)   # [Lq, D]

    out = jnp.dot(ctx, wf_ref[...], preferred_element_type=f32) + bf_ref[...]
    # dropout is identity at p=0.0; residual is the raw query input.
    out_ref[...] = _layer_norm(q_raw + out, gamma_ref[...], beta_ref[...])


def multi_head_attention(query, key, value, params, num_heads):
    """query/key/value: [L, D] f32. Returns (output [Lq, D], attention [H, Lq, Lk])."""
    lq, d = query.shape
    lk = key.shape[0]
    dph = d // num_heads
    # Module: scale = (key.size(-1) // num_heads) ** -0.5 where key.size(-1)
    # at that point is dim_per_head (after the per-head view) -> (dph // H)**-0.5.
    scale = float((dph // num_heads) ** (-0.5))

    bf16, f32 = jnp.bfloat16, jnp.float32
    args = (
        query.astype(f32), key.astype(f32), value.astype(f32),
        params["wq"].astype(bf16), params["wk"].astype(bf16),
        params["wv"].astype(bf16), params["wf"].astype(bf16),
        params["bq"].astype(f32).reshape(1, d), params["bk"].astype(f32).reshape(1, d),
        params["bv"].astype(f32).reshape(1, d), params["bf"].astype(f32).reshape(1, d),
        params["ln_gamma"].astype(f32).reshape(1, d),
        params["ln_beta"].astype(f32).reshape(1, d),
    )

    out_shape = (
        jax.ShapeDtypeStruct((lq, d), jnp.float32),
        jax.ShapeDtypeStruct((num_heads * lq, lk), jnp.float32),
    )
    kernel = functools.partial(mha_kernel, num_heads=num_heads, scale=scale)
    out, attn_flat = pl.pallas_call(
        kernel,
        out_shape=out_shape,
        in_specs=[pl.BlockSpec(memory_space=pltpu.MemorySpace.VMEM)] * len(args),
        out_specs=(
            pl.BlockSpec(memory_space=pltpu.MemorySpace.VMEM),
            pl.BlockSpec(memory_space=pltpu.MemorySpace.VMEM),
        ),
    )(*args)
    # [H*Lq, Lk] -> [H, Lq, Lk]: contiguous row-major reshape, free.
    return out, attn_flat.reshape(num_heads, lq, lk)


def init_params(key, model_dim):
    """Weights stored pre-transposed ([in, out], y = x @ W + b) and in bf16 so
    no per-call cast / extra HBM pass is needed before the kernel."""
    ks = jax.random.split(key, 10)
    bound = 1.0 / float(jnp.sqrt(model_dim))

    def lin(kw, kb):
        w = jax.random.uniform(kw, (model_dim, model_dim), jnp.float32, -bound, bound)
        b = jax.random.uniform(kb, (model_dim,), jnp.float32, -bound, bound)
        return w.astype(jnp.bfloat16), b

    wq, bq = lin(ks[0], ks[1])
    wk, bk = lin(ks[2], ks[3])
    wv, bv = lin(ks[4], ks[5])
    wf, bf = lin(ks[6], ks[7])
    gamma = jax.random.uniform(ks[8], (model_dim,), jnp.float32, 0.5, 1.5)
    beta = jax.random.uniform(ks[9], (model_dim,), jnp.float32, -0.1, 0.1)
    return {
        "wq": wq, "bq": bq, "wk": wk, "bk": bk, "wv": wv, "bv": bv,
        "wf": wf, "bf": bf, "ln_gamma": gamma, "ln_beta": beta,
    }


def mha_reference(query, key, value, params, num_heads, eps=1e-5):
    """Pure-JAX f32 reference mirroring the PyTorch module (v2 path)."""
    lq, d = query.shape
    dph = d // num_heads
    scale = (dph // num_heads) ** (-0.5)
    f32 = jnp.float32

    def lin(x, w, b):
        return x @ w.astype(f32) + b

    qp = lin(query, params["wq"], params["bq"])
    kp = lin(key, params["wk"], params["bk"])
    vp = lin(value, params["wv"], params["bv"])

    def heads(x):  # [L, D] -> [H, L, dph]
        return jnp.transpose(x.reshape(x.shape[0], num_heads, dph), (1, 0, 2))

    qh, kh, vh = heads(qp), heads(kp), heads(vp)
    attn = jax.nn.softmax(jnp.einsum("hqe,hke->hqk", qh, kh) * scale, axis=-1)
    ctx = jnp.einsum("hqk,hke->hqe", attn, vh)                # [H, Lq, dph]
    ctx = jnp.transpose(ctx, (1, 0, 2)).reshape(lq, d)        # [Lq, D]
    out = lin(ctx, params["wf"], params["bf"])

    x = query + out
    mu = jnp.mean(x, -1, keepdims=True)
    var = jnp.mean((x - mu) ** 2, -1, keepdims=True)
    out = (x - mu) / jnp.sqrt(var + eps) * params["ln_gamma"] + params["ln_beta"]
    return out, attn


if __name__ == "__main__":
    MODEL_DIM = 256   # module default
    NUM_HEADS = 4     # module default -> dim_per_head = 64
    SEQ = 8

    root = jax.random.PRNGKey(0)
    kq, kk, kv, kp = jax.random.split(root, 4)
    query = jax.random.normal(kq, (SEQ, MODEL_DIM), jnp.float32)
    key_in = jax.random.normal(kk, (SEQ, MODEL_DIM), jnp.float32)
    value = jax.random.normal(kv, (SEQ, MODEL_DIM), jnp.float32)
    params = init_params(kp, MODEL_DIM)

    out, attn = multi_head_attention(query, key_in, value, params, NUM_HEADS)
    out, attn = jax.block_until_ready((out, attn))

    ref_out, ref_attn = mha_reference(query, key_in, value, params, NUM_HEADS)
    # bf16 MXU operands (weights + activations) vs f32 reference.
    assert jnp.allclose(out, ref_out, atol=5e-2, rtol=5e-2), \
        float(jnp.max(jnp.abs(out - ref_out)))
    assert jnp.allclose(attn, ref_attn, atol=2e-2, rtol=2e-2), \
        float(jnp.max(jnp.abs(attn - ref_attn)))
    # Exact softmax divide -> returned attention rows sum to 1.
    assert jnp.allclose(jnp.sum(attn, axis=-1), 1.0, atol=1e-5)

    print("KERNEL_OK")
</pallas_src>

<mosaic_0001>
module attributes {stable_mosaic.version = 11 : i64} {
  func.func @mha_kernel(%arg0: memref<8x256xf32, #tpu.memory_space<vmem>>, %arg1: memref<8x256xf32, #tpu.memory_space<vmem>>, %arg2: memref<8x256xf32, #tpu.memory_space<vmem>>, %arg3: memref<256x256xbf16, #tpu.memory_space<vmem>>, %arg4: memref<256x256xbf16, #tpu.memory_space<vmem>>, %arg5: memref<256x256xbf16, #tpu.memory_space<vmem>>, %arg6: memref<256x256xbf16, #tpu.memory_space<vmem>>, %arg7: memref<1x256xf32, #tpu.memory_space<vmem>>, %arg8: memref<1x256xf32, #tpu.memory_space<vmem>>, %arg9: memref<1x256xf32, #tpu.memory_space<vmem>>, %arg10: memref<1x256xf32, #tpu.memory_space<vmem>>, %arg11: memref<1x256xf32, #tpu.memory_space<vmem>>, %arg12: memref<1x256xf32, #tpu.memory_space<vmem>>, %arg13: memref<8x256xf32, #tpu.memory_space<vmem>>, %arg14: memref<32x8xf32, #tpu.memory_space<vmem>>) attributes {dimension_semantics = [], scalar_prefetch = 0 : i64, scratch_operands = 0 : i64, tpu.core_type = #tpu.core_type<tc>} {
    %c0 = arith.constant 0 : index
    %c0_0 = arith.constant 0 : index
    %0 = vector.load %arg0[%c0, %c0_0] : memref<8x256xf32, #tpu.memory_space<vmem>>, vector<8x256xf32>
    %1 = arith.truncf %0 : vector<8x256xf32> to vector<8x256xbf16>
    %c0_1 = arith.constant 0 : index
    %c0_2 = arith.constant 0 : index
    %2 = vector.load %arg1[%c0_1, %c0_2] : memref<8x256xf32, #tpu.memory_space<vmem>>, vector<8x256xf32>
    %3 = arith.truncf %2 : vector<8x256xf32> to vector<8x256xbf16>
    %c0_3 = arith.constant 0 : index
    %c0_4 = arith.constant 0 : index
    %4 = vector.load %arg2[%c0_3, %c0_4] : memref<8x256xf32, #tpu.memory_space<vmem>>, vector<8x256xf32>
    %5 = arith.truncf %4 : vector<8x256xf32> to vector<8x256xbf16>
    %c0_5 = arith.constant 0 : index
    %c0_6 = arith.constant 0 : index
    %6 = vector.load %arg3[%c0_5, %c0_6] : memref<256x256xbf16, #tpu.memory_space<vmem>>, vector<256x256xbf16>
    %cst = arith.constant dense<0.000000e+00> : vector<8x256xf32>
    %7 = tpu.matmul %1, %6, %cst {dimension_numbers = #tpu.dot_dimension_numbers<[1], [0], [0], [1], [0, 0, 1, 1], [], []>} : vector<8x256xbf16>, vector<256x256xbf16>, vector<8x256xf32> -> vector<8x256xf32>
    %c0_7 = arith.constant 0 : index
    %c0_8 = arith.constant 0 : index
    %8 = vector.load %arg7[%c0_7, %c0_8] : memref<1x256xf32, #tpu.memory_space<vmem>>, vector<1x256xf32>
    %9 = vector.broadcast %8 : vector<1x256xf32> to vector<8x256xf32>
    %10 = arith.addf %7, %9 : vector<8x256xf32>
    %c0_9 = arith.constant 0 : index
    %c0_10 = arith.constant 0 : index
    %11 = vector.load %arg4[%c0_9, %c0_10] : memref<256x256xbf16, #tpu.memory_space<vmem>>, vector<256x256xbf16>
    %cst_11 = arith.constant dense<0.000000e+00> : vector<8x256xf32>
    %12 = tpu.matmul %3, %11, %cst_11 {dimension_numbers = #tpu.dot_dimension_numbers<[1], [0], [0], [1], [0, 0, 1, 1], [], []>} : vector<8x256xbf16>, vector<256x256xbf16>, vector<8x256xf32> -> vector<8x256xf32>
    %c0_12 = arith.constant 0 : index
    %c0_13 = arith.constant 0 : index
    %13 = vector.load %arg8[%c0_12, %c0_13] : memref<1x256xf32, #tpu.memory_space<vmem>>, vector<1x256xf32>
    %14 = vector.broadcast %13 : vector<1x256xf32> to vector<8x256xf32>
    %15 = arith.addf %12, %14 : vector<8x256xf32>
    %c0_14 = arith.constant 0 : index
    %c0_15 = arith.constant 0 : index
    %16 = vector.load %arg5[%c0_14, %c0_15] : memref<256x256xbf16, #tpu.memory_space<vmem>>, vector<256x256xbf16>
    %cst_16 = arith.constant dense<0.000000e+00> : vector<8x256xf32>
    %17 = tpu.matmul %5, %16, %cst_16 {dimension_numbers = #tpu.dot_dimension_numbers<[1], [0], [0], [1], [0, 0, 1, 1], [], []>} : vector<8x256xbf16>, vector<256x256xbf16>, vector<8x256xf32> -> vector<8x256xf32>
    %c0_17 = arith.constant 0 : index
    %c0_18 = arith.constant 0 : index
    %18 = vector.load %arg9[%c0_17, %c0_18] : memref<1x256xf32, #tpu.memory_space<vmem>>, vector<1x256xf32>
    %19 = vector.broadcast %18 : vector<1x256xf32> to vector<8x256xf32>
    %20 = arith.addf %17, %19 : vector<8x256xf32>
    %21 = arith.truncf %10 : vector<8x256xf32> to vector<8x256xbf16>
    %22 = arith.truncf %15 : vector<8x256xf32> to vector<8x256xbf16>
    %23 = arith.truncf %20 : vector<8x256xf32> to vector<8x256xbf16>
    %24 = vector.extract_strided_slice %21 {offsets = [0, 0], sizes = [8, 64], strides = [1, 1]} : vector<8x256xbf16> to vector<8x64xbf16>
    %25 = vector.extract_strided_slice %22 {offsets = [0, 0], sizes = [8, 64], strides = [1, 1]} : vector<8x256xbf16> to vector<8x64xbf16>
    %cst_19 = arith.constant dense<0.000000e+00> : vector<8x8xf32>
    %26 = tpu.matmul %24, %25, %cst_19 {dimension_numbers = #tpu.dot_dimension_numbers<[1], [1], [0], [0], [0, 0, 1, 0], [], []>} : vector<8x64xbf16>, vector<8x64xbf16>, vector<8x8xf32> -> vector<8x8xf32>
    %27 = vector.extract_strided_slice %21 {offsets = [0, 64], sizes = [8, 64], strides = [1, 1]} : vector<8x256xbf16> to vector<8x64xbf16>
    %28 = vector.extract_strided_slice %22 {offsets = [0, 64], sizes = [8, 64], strides = [1, 1]} : vector<8x256xbf16> to vector<8x64xbf16>
    %cst_20 = arith.constant dense<0.000000e+00> : vector<8x8xf32>
    %29 = tpu.matmul %27, %28, %cst_20 {dimension_numbers = #tpu.dot_dimension_numbers<[1], [1], [0], [0], [0, 0, 1, 0], [], []>} : vector<8x64xbf16>, vector<8x64xbf16>, vector<8x8xf32> -> vector<8x8xf32>
    %30 = vector.extract_strided_slice %21 {offsets = [0, 128], sizes = [8, 64], strides = [1, 1]} : vector<8x256xbf16> to vector<8x64xbf16>
    %31 = vector.extract_strided_slice %22 {offsets = [0, 128], sizes = [8, 64], strides = [1, 1]} : vector<8x256xbf16> to vector<8x64xbf16>
    %cst_21 = arith.constant dense<0.000000e+00> : vector<8x8xf32>
    %32 = tpu.matmul %30, %31, %cst_21 {dimension_numbers = #tpu.dot_dimension_numbers<[1], [1], [0], [0], [0, 0, 1, 0], [], []>} : vector<8x64xbf16>, vector<8x64xbf16>, vector<8x8xf32> -> vector<8x8xf32>
    %33 = vector.extract_strided_slice %21 {offsets = [0, 192], sizes = [8, 64], strides = [1, 1]} : vector<8x256xbf16> to vector<8x64xbf16>
    %34 = vector.extract_strided_slice %22 {offsets = [0, 192], sizes = [8, 64], strides = [1, 1]} : vector<8x256xbf16> to vector<8x64xbf16>
    %cst_22 = arith.constant dense<0.000000e+00> : vector<8x8xf32>
    %35 = tpu.matmul %33, %34, %cst_22 {dimension_numbers = #tpu.dot_dimension_numbers<[1], [1], [0], [0], [0, 0, 1, 0], [], []>} : vector<8x64xbf16>, vector<8x64xbf16>, vector<8x8xf32> -> vector<8x8xf32>
    %36 = tpu.concatenate %26, %29, %32, %35 in 0 : vector<8x8xf32>, vector<8x8xf32>, vector<8x8xf32>, vector<8x8xf32> -> vector<32x8xf32>
    %cst_23 = arith.constant 2.500000e-01 : f32
    %37 = vector.broadcast %cst_23 : f32 to vector<32x8xf32>
    %38 = arith.mulf %36, %37 : vector<32x8xf32>
    %cst_24 = arith.constant dense<0xFF800000> : vector<32xf32>
    %39 = vector.multi_reduction <maximumf>, %38, %cst_24 [1] : vector<32x8xf32> to vector<32xf32>
    %40 = vector.shape_cast %39 : vector<32xf32> to vector<32x1xf32>
    %41 = vector.broadcast %40 : vector<32x1xf32> to vector<32x8xf32>
    %42 = arith.subf %38, %41 : vector<32x8xf32>
    %43 = math.exp %42 : vector<32x8xf32>
    %cst_25 = arith.constant dense<0.000000e+00> : vector<32xf32>
    %44 = vector.multi_reduction <add>, %43, %cst_25 [1] : vector<32x8xf32> to vector<32xf32>
    %45 = vector.shape_cast %44 : vector<32xf32> to vector<32x1xf32>
    %46 = vector.broadcast %45 : vector<32x1xf32> to vector<32x8xf32>
    %47 = arith.divf %43, %46 : vector<32x8xf32>
    %c0_26 = arith.constant 0 : index
    %c0_27 = arith.constant 0 : index
    %48 = vector.load %arg14[%c0_26, %c0_27] : memref<32x8xf32, #tpu.memory_space<vmem>>, vector<32x8xf32>
    tpu.vector_store %arg14[%c0_26, %c0_27], %47 {strides = array<i32>} : memref<32x8xf32, #tpu.memory_space<vmem>>, vector<32x8xf32>,
    %49 = arith.truncf %47 : vector<32x8xf32> to vector<32x8xbf16>
    %50 = vector.extract_strided_slice %23 {offsets = [0, 0], sizes = [8, 64], strides = [1, 1]} : vector<8x256xbf16> to vector<8x64xbf16>
    %51 = vector.extract_strided_slice %49 {offsets = [0, 0], sizes = [8, 8], strides = [1, 1]} : vector<32x8xbf16> to vector<8x8xbf16>
    %cst_28 = arith.constant dense<0.000000e+00> : vector<8x64xf32>
    %52 = tpu.matmul %51, %50, %cst_28 {dimension_numbers = #tpu.dot_dimension_numbers<[1], [0], [0], [1], [0, 0, 1, 1], [], []>} : vector<8x8xbf16>, vector<8x64xbf16>, vector<8x64xf32> -> vector<8x64xf32>
    %53 = vector.extract_strided_slice %23 {offsets = [0, 64], sizes = [8, 64], strides = [1, 1]} : vector<8x256xbf16> to vector<8x64xbf16>
    %54 = vector.extract_strided_slice %49 {offsets = [8, 0], sizes = [8, 8], strides = [1, 1]} : vector<32x8xbf16> to vector<8x8xbf16>
    %cst_29 = arith.constant dense<0.000000e+00> : vector<8x64xf32>
    %55 = tpu.matmul %54, %53, %cst_29 {dimension_numbers = #tpu.dot_dimension_numbers<[1], [0], [0], [1], [0, 0, 1, 1], [], []>} : vector<8x8xbf16>, vector<8x64xbf16>, vector<8x64xf32> -> vector<8x64xf32>
    %56 = vector.extract_strided_slice %23 {offsets = [0, 128], sizes = [8, 64], strides = [1, 1]} : vector<8x256xbf16> to vector<8x64xbf16>
    %57 = vector.extract_strided_slice %49 {offsets = [16, 0], sizes = [8, 8], strides = [1, 1]} : vector<32x8xbf16> to vector<8x8xbf16>
    %cst_30 = arith.constant dense<0.000000e+00> : vector<8x64xf32>
    %58 = tpu.matmul %57, %56, %cst_30 {dimension_numbers = #tpu.dot_dimension_numbers<[1], [0], [0], [1], [0, 0, 1, 1], [], []>} : vector<8x8xbf16>, vector<8x64xbf16>, vector<8x64xf32> -> vector<8x64xf32>
    %59 = vector.extract_strided_slice %23 {offsets = [0, 192], sizes = [8, 64], strides = [1, 1]} : vector<8x256xbf16> to vector<8x64xbf16>
    %60 = vector.extract_strided_slice %49 {offsets = [24, 0], sizes = [8, 8], strides = [1, 1]} : vector<32x8xbf16> to vector<8x8xbf16>
    %cst_31 = arith.constant dense<0.000000e+00> : vector<8x64xf32>
    %61 = tpu.matmul %60, %59, %cst_31 {dimension_numbers = #tpu.dot_dimension_numbers<[1], [0], [0], [1], [0, 0, 1, 1], [], []>} : vector<8x8xbf16>, vector<8x64xbf16>, vector<8x64xf32> -> vector<8x64xf32>
    %62 = tpu.concatenate %52, %55, %58, %61 in 1 : vector<8x64xf32>, vector<8x64xf32>, vector<8x64xf32>, vector<8x64xf32> -> vector<8x256xf32>
    %63 = arith.truncf %62 : vector<8x256xf32> to vector<8x256xbf16>
    %c0_32 = arith.constant 0 : index
    %c0_33 = arith.constant 0 : index
    %64 = vector.load %arg6[%c0_32, %c0_33] : memref<256x256xbf16, #tpu.memory_space<vmem>>, vector<256x256xbf16>
    %cst_34 = arith.constant dense<0.000000e+00> : vector<8x256xf32>
    %65 = tpu.matmul %63, %64, %cst_34 {dimension_numbers = #tpu.dot_dimension_numbers<[1], [0], [0], [1], [0, 0, 1, 1], [], []>} : vector<8x256xbf16>, vector<256x256xbf16>, vector<8x256xf32> -> vector<8x256xf32>
    %c0_35 = arith.constant 0 : index
    %c0_36 = arith.constant 0 : index
    %66 = vector.load %arg10[%c0_35, %c0_36] : memref<1x256xf32, #tpu.memory_space<vmem>>, vector<1x256xf32>
    %67 = vector.broadcast %66 : vector<1x256xf32> to vector<8x256xf32>
    %68 = arith.addf %65, %67 : vector<8x256xf32>
    %69 = arith.addf %0, %68 : vector<8x256xf32>
    %c0_37 = arith.constant 0 : index
    %c0_38 = arith.constant 0 : index
    %70 = vector.load %arg11[%c0_37, %c0_38] : memref<1x256xf32, #tpu.memory_space<vmem>>, vector<1x256xf32>
    %c0_39 = arith.constant 0 : index
    %c0_40 = arith.constant 0 : index
    %71 = vector.load %arg12[%c0_39, %c0_40] : memref<1x256xf32, #tpu.memory_space<vmem>>, vector<1x256xf32>
    %cst_41 = arith.constant dense<0.000000e+00> : vector<8xf32>
    %72 = vector.multi_reduction <add>, %69, %cst_41 [1] : vector<8x256xf32> to vector<8xf32>
    %73 = vector.shape_cast %72 : vector<8xf32> to vector<8x1xf32>
    %cst_42 = arith.constant 2.560000e+02 : f32
    %74 = vector.broadcast %cst_42 : f32 to vector<8x1xf32>
    %75 = arith.divf %73, %74 : vector<8x1xf32>
    %76 = vector.broadcast %75 : vector<8x1xf32> to vector<8x256xf32>
    %77 = arith.subf %69, %76 : vector<8x256xf32>
    %78 = arith.mulf %77, %77 : vector<8x256xf32>
    %cst_43 = arith.constant dense<0.000000e+00> : vector<8xf32>
    %79 = vector.multi_reduction <add>, %78, %cst_43 [1] : vector<8x256xf32> to vector<8xf32>
    %80 = vector.shape_cast %79 : vector<8xf32> to vector<8x1xf32>
    %cst_44 = arith.constant 2.560000e+02 : f32
    %81 = vector.broadcast %cst_44 : f32 to vector<8x1xf32>
    %82 = arith.divf %80, %81 : vector<8x1xf32>
    %cst_45 = arith.constant 9.99999974E-6 : f32
    %83 = vector.broadcast %cst_45 : f32 to vector<8x1xf32>
    %84 = arith.addf %82, %83 : vector<8x1xf32>
    %85 = math.rsqrt %84 : vector<8x1xf32>
    %86 = vector.broadcast %85 : vector<8x1xf32> to vector<8x256xf32>
    %87 = arith.mulf %77, %86 : vector<8x256xf32>
    %88 = vector.broadcast %70 : vector<1x256xf32> to vector<8x256xf32>
    %89 = arith.mulf %87, %88 : vector<8x256xf32>
    %90 = vector.broadcast %71 : vector<1x256xf32> to vector<8x256xf32>
    %91 = arith.addf %89, %90 : vector<8x256xf32>
    %c0_46 = arith.constant 0 : index
    %c0_47 = arith.constant 0 : index
    %92 = vector.load %arg13[%c0_46, %c0_47] : memref<8x256xf32, #tpu.memory_space<vmem>>, vector<8x256xf32>
    tpu.vector_store %arg13[%c0_46, %c0_47], %91 {strides = array<i32>} : memref<8x256xf32, #tpu.memory_space<vmem>>, vector<8x256xf32>,
    return
  }
}

</mosaic_0001>

<llo_original>
// kernel: tpu_custom_call.1
$region0: #{tpu_custom_call.1}
  #allocation0 [shape = 'u32[]', space=smem, size = 0x4, offset = 0x4, fixed_abs, tag = 'smem constant byte address 0x4 - core index']
  #allocation1 [shape = 'u32[144,128]{1,0:T(1,128)}', space=vmem, size = 0x12000, scoped, tag = 'internal scratch']
  %s0 = inlined_call_operand.hbm [shape: f32[8,256], index: 0, kind: input, shape index: {}]
  %s1 = inlined_call_operand.hbm [shape: f32[8,256], index: 1, kind: input, shape index: {}]
  %s2 = inlined_call_operand.hbm [shape: f32[8,256], index: 2, kind: input, shape index: {}]
  %s3 = inlined_call_operand.hbm [shape: bf16[256,256], index: 3, kind: input, shape index: {}]
  %s4 = inlined_call_operand.hbm [shape: bf16[256,256], index: 4, kind: input, shape index: {}]
  %s5 = inlined_call_operand.hbm [shape: bf16[256,256], index: 5, kind: input, shape index: {}]
  %s6 = inlined_call_operand.hbm [shape: bf16[256,256], index: 6, kind: input, shape index: {}]
  %s7 = inlined_call_operand.vmem [shape: f32[1,256], index: 7, kind: input, shape index: {}]
  %s8 = inlined_call_operand.vmem [shape: f32[1,256], index: 8, kind: input, shape index: {}]
  %s9 = inlined_call_operand.vmem [shape: f32[1,256], index: 9, kind: input, shape index: {}]
  %s10 = inlined_call_operand.vmem [shape: f32[1,256], index: 10, kind: input, shape index: {}]
  %s11 = inlined_call_operand.vmem [shape: f32[1,256], index: 11, kind: input, shape index: {}]
  %s12 = inlined_call_operand.vmem [shape: f32[1,256], index: 12, kind: input, shape index: {}]
  %s13 = inlined_call_operand.hbm [shape: f32[8,256], index: 13, kind: output, shape index: {0}]
  %s14 = inlined_call_operand.vmem [shape: f32[32,8], index: 14, kind: output, shape index: {1}]
  %15 = xla_tuple %s13, %s14
  %s16 = sld [smem:[#allocation0]]
  $region98: #{tpu_custom_call.1} parent=0
    _
  %s18 = ssub.s32 1, %s16
  %s19 = scalar_select 0, %s18, %s16
  $region1: #{tpu_custom_call.1} parent=0
    #allocation2 [shape = 'u8[8192]{0}', space=vmem, size = 0x2000, scoped, tag = 'input window, operand 0, single buffered']
    #allocation3 [shape = 's32[1]{0}', space=sflag, size = 0x4, scoped, tag = 'scoped memory for tpu_custom_call.1']
    #allocation4 [shape = 's32[1]{0}', space=sflag, size = 0x4, scoped, tag = 'scoped memory for tpu_custom_call.1']
    #allocation5 [shape = 'u8[8192]{0}', space=vmem, size = 0x2000, scoped, tag = 'input window, operand 1, single buffered']
    #allocation6 [shape = 's32[1]{0}', space=sflag, size = 0x4, scoped, tag = 'scoped memory for tpu_custom_call.1']
    #allocation7 [shape = 'u8[8192]{0}', space=vmem, size = 0x2000, scoped, tag = 'input window, operand 2, single buffered']
    #allocation8 [shape = 'u8[131072]{0}', space=vmem, size = 0x20000, scoped, tag = 'input window, operand 3, single buffered']
    #allocation9 [shape = 's32[1]{0}', space=sflag, size = 0x4, scoped, tag = 'scoped memory for tpu_custom_call.1']
    #allocation10 [shape = 'u8[131072]{0}', space=vmem, size = 0x20000, scoped, tag = 'input window, operand 4, single buffered']
    #allocation11 [shape = 'u8[131072]{0}', space=vmem, size = 0x20000, scoped, tag = 'input window, operand 5, single buffered']
    #allocation12 [shape = 's32[1]{0}', space=sflag, size = 0x4, scoped, tag = 'scoped memory for tpu_custom_call.1']
    #allocation13 [shape = 'u8[131072]{0}', space=vmem, size = 0x20000, scoped, tag = 'input window, operand 6, single buffered']
    #allocation14 [shape = 'u8[8192]{0}', space=vmem, size = 0x2000, scoped, tag = 'output window, operand 0, single buffered']
    %20 = vsyncpa [#allocation3], 0
    %21 = vsyncpa [#allocation6], 0
    %22 = vsyncpa [#allocation9], 0
    %23 = vsyncpa [#allocation12], 0
    %24 = vsyncpa [#allocation4], 0
    // Predicated region
    $region2: #{tpu_custom_call.1} parent=1 // pred_check
      _
    $region3: #{tpu_custom_call.1} parent=1 // pred_check_branch
      %26 = sbr.rel (0) target = $region5
    $region4: #{tpu_custom_call.1} parent=1 // pred_region
      %s28 = ssub.s32 256, 256
      %29 = vsyncadd [#allocation3], %s28
      %s31 = sshll.u32 [#allocation2], 4
      %s32 = int_to_ptr.vmem [resolvable:$true] %s31
      %34 = dma.hbm_to_vmem [thread:$0]  %s0, 256, %s32, [#allocation3]
    $region5: #{tpu_custom_call.1} parent=1 // pred_fallthru
      _
    // Predicated region
    $region6: #{tpu_custom_call.1} parent=1 // pred_check
      _
    $region7: #{tpu_custom_call.1} parent=1 // pred_check_branch
      %36 = sbr.rel (0) target = $region9
    $region8: #{tpu_custom_call.1} parent=1 // pred_region
      %s38 = ssub.s32 256, 256
      %39 = vsyncadd [#allocation6], %s38
      %s41 = sshll.u32 [#allocation5], 4
      %s42 = int_to_ptr.vmem [resolvable:$true] %s41
      %44 = dma.hbm_to_vmem [thread:$0]  %s1, 256, %s42, [#allocation6]
    $region9: #{tpu_custom_call.1} parent=1 // pred_fallthru
      _
    // Predicated region
    $region10: #{tpu_custom_call.1} parent=1 // pred_check
      _
    $region11: #{tpu_custom_call.1} parent=1 // pred_check_branch
      %46 = sbr.rel (0) target = $region13
    $region12: #{tpu_custom_call.1} parent=1 // pred_region
      %s48 = ssub.s32 256, 256
      %49 = vsyncadd [#allocation6], %s48
      %s51 = sshll.u32 [#allocation7], 4
      %s52 = int_to_ptr.vmem [resolvable:$true] %s51
      %54 = dma.hbm_to_vmem [thread:$0]  %s2, 256, %s52, [#allocation6]
    $region13: #{tpu_custom_call.1} parent=1 // pred_fallthru
      _
    // Predicated region
    $region14: #{tpu_custom_call.1} parent=1 // pred_check
      _
    $region15: #{tpu_custom_call.1} parent=1 // pred_check_branch
      %56 = sbr.rel (0) target = $region17
    $region16: #{tpu_custom_call.1} parent=1 // pred_region
      %s58 = ssub.s32 4096, 4096
      %59 = vsyncadd [#allocation9], %s58
      %s60 = sshll.u32 [#allocation8], 4
      %s61 = int_to_ptr.vmem [resolvable:$true] %s60
      %66 = dma.hbm_to_vmem [thread:$0]  %s3, 4096, %s61, [#allocation9], 128, 128, 8
    $region17: #{tpu_custom_call.1} parent=1 // pred_fallthru
      _
    // Predicated region
    $region18: #{tpu_custom_call.1} parent=1 // pred_check
      _
    $region19: #{tpu_custom_call.1} parent=1 // pred_check_branch
      %68 = sbr.rel (0) target = $region21
    $region20: #{tpu_custom_call.1} parent=1 // pred_region
      %s70 = ssub.s32 4096, 4096
      %71 = vsyncadd [#allocation9], %s70
      %s72 = sshll.u32 [#allocation10], 4
      %s73 = int_to_ptr.vmem [resolvable:$true] %s72
      %78 = dma.hbm_to_vmem [thread:$0]  %s4, 4096, %s73, [#allocation9], 128, 128, 8
    $region21: #{tpu_custom_call.1} parent=1 // pred_fallthru
      _
    // Predicated region
    $region22: #{tpu_custom_call.1} parent=1 // pred_check
      _
    $region23: #{tpu_custom_call.1} parent=1 // pred_check_branch
      %80 = sbr.rel (0) target = $region25
    $region24: #{tpu_custom_call.1} parent=1 // pred_region
      %s82 = ssub.s32 4096, 4096
      %83 = vsyncadd [#allocation12], %s82
      %s84 = sshll.u32 [#allocation11], 4
      %s85 = int_to_ptr.vmem [resolvable:$true] %s84
      %90 = dma.hbm_to_vmem [thread:$0]  %s5, 4096, %s85, [#allocation12], 128, 128, 8
    $region25: #{tpu_custom_call.1} parent=1 // pred_fallthru
      _
    // Predicated region
    $region26: #{tpu_custom_call.1} parent=1 // pred_check
      _
    $region27: #{tpu_custom_call.1} parent=1 // pred_check_branch
      %92 = sbr.rel (0) target = $region29
    $region28: #{tpu_custom_call.1} parent=1 // pred_region
      %s94 = ssub.s32 4096, 4096
      %95 = vsyncadd [#allocation12], %s94
      %s96 = sshll.u32 [#allocation13], 4
      %s97 = int_to_ptr.vmem [resolvable:$true] %s96
      %102 = dma.hbm_to_vmem [thread:$0]  %s6, 4096, %s97, [#allocation12], 128, 128, 8
    $region29: #{tpu_custom_call.1} parent=1 // pred_fallthru
      _
    // Predicated region
    $region30: #{tpu_custom_call.1} parent=1 // pred_check
      _
    $region31: #{tpu_custom_call.1} parent=1 // pred_check_branch
      %104 = sbr.rel (0) target = $region33
    $region32: #{tpu_custom_call.1} parent=1 // pred_region
      _
    $region33: #{tpu_custom_call.1} parent=1 // pred_fallthru
      _
    // Predicated region
    $region34: #{tpu_custom_call.1} parent=1 // pred_check
      _
    $region35: #{tpu_custom_call.1} parent=1 // pred_check_branch
      %106 = sbr.rel (0) target = $region37
    $region36: #{tpu_custom_call.1} parent=1 // pred_region
      _
    $region37: #{tpu_custom_call.1} parent=1 // pred_fallthru
      _
    // Predicated region
    $region38: #{tpu_custom_call.1} parent=1 // pred_check
      _
    $region39: #{tpu_custom_call.1} parent=1 // pred_check_branch
      %108 = sbr.rel (0) target = $region41
    $region40: #{tpu_custom_call.1} parent=1 // pred_region
      _
    $region41: #{tpu_custom_call.1} parent=1 // pred_fallthru
      _
    // Predicated region
    $region42: #{tpu_custom_call.1} parent=1 // pred_check
      _
    $region43: #{tpu_custom_call.1} parent=1 // pred_check_branch
      %110 = sbr.rel (0) target = $region45
    $region44: #{tpu_custom_call.1} parent=1 // pred_region
      _
    $region45: #{tpu_custom_call.1} parent=1 // pred_fallthru
      _
    // Predicated region
    $region46: #{tpu_custom_call.1} parent=1 // pred_check
      _
    $region47: #{tpu_custom_call.1} parent=1 // pred_check_branch
      %112 = sbr.rel (0) target = $region49
    $region48: #{tpu_custom_call.1} parent=1 // pred_region
      _
    $region49: #{tpu_custom_call.1} parent=1 // pred_fallthru
      _
    // Predicated region
    $region50: #{tpu_custom_call.1} parent=1 // pred_check
      _
    $region51: #{tpu_custom_call.1} parent=1 // pred_check_branch
      %114 = sbr.rel (0) target = $region53
    $region52: #{tpu_custom_call.1} parent=1 // pred_region
      _
    $region53: #{tpu_custom_call.1} parent=1 // pred_fallthru
      _
    // Predicated region
    $region54: #{tpu_custom_call.1} parent=1 // pred_check
      _
    $region55: #{tpu_custom_call.1} parent=1 // pred_check_branch
      %116 = sbr.rel (0) target = $region57
    $region56: #{tpu_custom_call.1} parent=1 // pred_region
      %117 = dma.done [#allocation3], 256
    $region57: #{tpu_custom_call.1} parent=1 // pred_fallthru
      _
    // Predicated region
    $region58: #{tpu_custom_call.1} parent=1 // pred_check
      _
    $region59: #{tpu_custom_call.1} parent=1 // pred_check_branch
      %119 = sbr.rel (0) target = $region61
    $region60: #{tpu_custom_call.1} parent=1 // pred_region
      %120 = dma.done [#allocation6], 256
    $region61: #{tpu_custom_call.1} parent=1 // pred_fallthru
      _
    // Predicated region
    $region62: #{tpu_custom_call.1} parent=1 // pred_check
      _
    $region63: #{tpu_custom_call.1} parent=1 // pred_check_branch
      %122 = sbr.rel (0) target = $region65
    $region64: #{tpu_custom_call.1} parent=1 // pred_region
      %123 = dma.done [#allocation6], 256
    $region65: #{tpu_custom_call.1} parent=1 // pred_fallthru
      _
    // Predicated region
    $region66: #{tpu_custom_call.1} parent=1 // pred_check
      _
    $region67: #{tpu_custom_call.1} parent=1 // pred_check_branch
      %125 = sbr.rel (0) target = $region69
    $region68: #{tpu_custom_call.1} parent=1 // pred_region
      %126 = dma.done [#allocation9], 4096
    $region69: #{tpu_custom_call.1} parent=1 // pred_fallthru
      _
    // Predicated region
    $region70: #{tpu_custom_call.1} parent=1 // pred_check
      _
    $region71: #{tpu_custom_call.1} parent=1 // pred_check_branch
      %128 = sbr.rel (0) target = $region73
    $region72: #{tpu_custom_call.1} parent=1 // pred_region
      %129 = dma.done [#allocation9], 4096
    $region73: #{tpu_custom_call.1} parent=1 // pred_fallthru
      _
    // Predicated region
    $region74: #{tpu_custom_call.1} parent=1 // pred_check
      _
    $region75: #{tpu_custom_call.1} parent=1 // pred_check_branch
      %131 = sbr.rel (0) target = $region77
    $region76: #{tpu_custom_call.1} parent=1 // pred_region
      %132 = dma.done [#allocation12], 4096
    $region77: #{tpu_custom_call.1} parent=1 // pred_fallthru
      _
    // Predicated region
    $region78: #{tpu_custom_call.1} parent=1 // pred_check
      _
    $region79: #{tpu_custom_call.1} parent=1 // pred_check_branch
      %134 = sbr.rel (0) target = $region81
    $region80: #{tpu_custom_call.1} parent=1 // pred_region
      %135 = dma.done [#allocation12], 4096
    $region81: #{tpu_custom_call.1} parent=1 // pred_fallthru
      _
    %v137 = vld [vmem:[#allocation2] sm:$0xff]
    %v138 = vld [vmem:[#allocation2 + $0x8] sm:$0xff]
    %v139 = vpack.c.bf16 %v137, %v137
    %v140 = vpack.c.bf16 %v138, %v138
    %v141 = vld [vmem:[#allocation5] sm:$0xff]
    %v142 = vld [vmem:[#allocation5 + $0x8] sm:$0xff]
    %v143 = vpack.c.bf16 %v141, %v141
    %v144 = vpack.c.bf16 %v142, %v142
    %v145 = vld [vmem:[#allocation7] sm:$0xff]
    %v146 = vld [vmem:[#allocation7 + $0x8] sm:$0xff]
    %v147 = vpack.c.bf16 %v145, %v145
    %v148 = vpack.c.bf16 %v146, %v146
    %v149 = vld [vmem:[#allocation8] sm:$0xff]
    %v150 = vld [vmem:[#allocation8 + $0x8] sm:$0xff]
    %v151 = vld [vmem:[#allocation8 + $0x10] sm:$0xff]
    %v152 = vld [vmem:[#allocation8 + $0x18] sm:$0xff]
    %v153 = vld [vmem:[#allocation8 + $0x20] sm:$0xff]
    %v154 = vld [vmem:[#allocation8 + $0x28] sm:$0xff]
    %v155 = vld [vmem:[#allocation8 + $0x30] sm:$0xff]
    %v156 = vld [vmem:[#allocation8 + $0x38] sm:$0xff]
    %v157 = vld [vmem:[#allocation8 + $0x40] sm:$0xff]
    %v158 = vld [vmem:[#allocation8 + $0x48] sm:$0xff]
    %v159 = vld [vmem:[#allocation8 + $0x50] sm:$0xff]
    %v160 = vld [vmem:[#allocation8 + $0x58] sm:$0xff]
    %v161 = vld [vmem:[#allocation8 + $0x60] sm:$0xff]
    %v162 = vld [vmem:[#allocation8 + $0x68] sm:$0xff]
    %v163 = vld [vmem:[#allocation8 + $0x70] sm:$0xff]
    %v164 = vld [vmem:[#allocation8 + $0x78] sm:$0xff]
    %v165 = vld [vmem:[#allocation8 + $0x80] sm:$0xff]
    %v166 = vld [vmem:[#allocation8 + $0x88] sm:$0xff]
    %v167 = vld [vmem:[#allocation8 + $0x90] sm:$0xff]
    %v168 = vld [vmem:[#allocation8 + $0x98] sm:$0xff]
    %v169 = vld [vmem:[#allocation8 + $0xa0] sm:$0xff]
    %v170 = vld [vmem:[#allocation8 + $0xa8] sm:$0xff]
    %v171 = vld [vmem:[#allocation8 + $0xb0] sm:$0xff]
    %v172 = vld [vmem:[#allocation8 + $0xb8] sm:$0xff]
    %v173 = vld [vmem:[#allocation8 + $0xc0] sm:$0xff]
    %v174 = vld [vmem:[#allocation8 + $0xc8] sm:$0xff]
    %v175 = vld [vmem:[#allocation8 + $0xd0] sm:$0xff]
    %v176 = vld [vmem:[#allocation8 + $0xd8] sm:$0xff]
    %v177 = vld [vmem:[#allocation8 + $0xe0] sm:$0xff]
    %v178 = vld [vmem:[#allocation8 + $0xe8] sm:$0xff]
    %v179 = vld [vmem:[#allocation8 + $0xf0] sm:$0xff]
    %v180 = vld [vmem:[#allocation8 + $0xf8] sm:$0xff]
    %v181 = vld [vmem:[%s7] sm:$0x3]
    %v183 = vlaneseq
    %v184 = vshrl.u32 %v183, 7
    %v185 = vsub.s32 0, %v184
    %v186 = vrot.slane %v181, %v185
    %v187 = vlaneseq
    %v188 = vshrl.u32 %v187, 7
    %v189 = vsub.s32 1, %v188
    %v190 = vrot.slane %v181, %v189
    %v225 = vunpack.c.l.b16 %v149
    %v226 = vunpack.c.h.b16 %v149
    %v227 = vunpack.c.l.b16 %v150
    %v228 = vunpack.c.h.b16 %v150
    %v229 = vunpack.c.l.b16 %v151
    %v230 = vunpack.c.h.b16 %v151
    %v231 = vunpack.c.l.b16 %v152
    %v232 = vunpack.c.h.b16 %v152
    %v233 = vunpack.c.l.b16 %v153
    %v234 = vunpack.c.h.b16 %v153
    %v235 = vunpack.c.l.b16 %v154
    %v236 = vunpack.c.h.b16 %v154
    %v237 = vunpack.c.l.b16 %v155
    %v238 = vunpack.c.h.b16 %v155
    %v239 = vunpack.c.l.b16 %v156
    %v240 = vunpack.c.h.b16 %v156
    %v241 = vunpack.c.l.b16 %v157
    %v242 = vunpack.c.h.b16 %v157
    %v243 = vunpack.c.l.b16 %v158
    %v244 = vunpack.c.h.b16 %v158
    %v245 = vunpack.c.l.b16 %v159
    %v246 = vunpack.c.h.b16 %v159
    %v247 = vunpack.c.l.b16 %v160
    %v248 = vunpack.c.h.b16 %v160
    %v249 = vunpack.c.l.b16 %v161
    %v250 = vunpack.c.h.b16 %v161
    %v251 = vunpack.c.l.b16 %v162
    %v252 = vunpack.c.h.b16 %v162
    %v253 = vunpack.c.l.b16 %v163
    %v254 = vunpack.c.h.b16 %v163
    %v255 = vunpack.c.l.b16 %v164
    %v256 = vunpack.c.h.b16 %v164
    %v257 = vunpack.c.l.b16 %v165
    %v258 = vunpack.c.h.b16 %v165
    %v259 = vunpack.c.l.b16 %v166
    %v260 = vunpack.c.h.b16 %v166
    %v261 = vunpack.c.l.b16 %v167
    %v262 = vunpack.c.h.b16 %v167
    %v263 = vunpack.c.l.b16 %v168
    %v264 = vunpack.c.h.b16 %v168
    %v265 = vunpack.c.l.b16 %v169
    %v266 = vunpack.c.h.b16 %v169
    %v267 = vunpack.c.l.b16 %v170
    %v268 = vunpack.c.h.b16 %v170
    %v269 = vunpack.c.l.b16 %v171
    %v270 = vunpack.c.h.b16 %v171
    %v271 = vunpack.c.l.b16 %v172
    %v272 = vunpack.c.h.b16 %v172
    %v273 = vunpack.c.l.b16 %v173
    %v274 = vunpack.c.h.b16 %v173
    %v275 = vunpack.c.l.b16 %v174
    %v276 = vunpack.c.h.b16 %v174
    %v277 = vunpack.c.l.b16 %v175
    %v278 = vunpack.c.h.b16 %v175
    %v279 = vunpack.c.l.b16 %v176
    %v280 = vunpack.c.h.b16 %v176
    %v281 = vunpack.c.l.b16 %v177
    %v282 = vunpack.c.h.b16 %v177
    %v283 = vunpack.c.l.b16 %v178
    %v284 = vunpack.c.h.b16 %v178
    %v285 = vunpack.c.l.b16 %v179
    %v286 = vunpack.c.h.b16 %v179
    %v287 = vunpack.c.l.b16 %v180
    %v288 = vunpack.c.h.b16 %v180
    %v289 = vpack.c.b16 %v227, %v225
    %v290 = vpack.c.b16 %v228, %v226
    %v291 = vpack.c.b16 %v231, %v229
    %v292 = vpack.c.b16 %v232, %v230
    %v293 = vpack.c.b16 %v235, %v233
    %v294 = vpack.c.b16 %v236, %v234
    %v295 = vpack.c.b16 %v239, %v237
    %v296 = vpack.c.b16 %v240, %v238
    %v297 = vpack.c.b16 %v243, %v241
    %v298 = vpack.c.b16 %v244, %v242
    %v299 = vpack.c.b16 %v247, %v245
    %v300 = vpack.c.b16 %v248, %v246
    %v301 = vpack.c.b16 %v251, %v249
    %v302 = vpack.c.b16 %v252, %v250
    %v303 = vpack.c.b16 %v255, %v253
    %v304 = vpack.c.b16 %v256, %v254
    %v305 = vpack.c.b16 %v259, %v257
    %v306 = vpack.c.b16 %v260, %v258
    %v307 = vpack.c.b16 %v263, %v261
    %v308 = vpack.c.b16 %v264, %v262
    %v309 = vpack.c.b16 %v267, %v265
    %v310 = vpack.c.b16 %v268, %v266
    %v311 = vpack.c.b16 %v271, %v269
    %v312 = vpack.c.b16 %v272, %v270
    %v313 = vpack.c.b16 %v275, %v273
    %v314 = vpack.c.b16 %v276, %v274
    %v315 = vpack.c.b16 %v279, %v277
    %v316 = vpack.c.b16 %v280, %v278
    %v317 = vpack.c.b16 %v283, %v281
    %v318 = vpack.c.b16 %v284, %v282
    %v319 = vpack.c.b16 %v287, %v285
    %v320 = vpack.c.b16 %v288, %v286
    %353 = vmatprep.subr.bf16.mxu0 %v290
    %354 = vmatpush1.bf16.msra.mxu0 %v289
    %355 = vmatprep.subr.bf16.mxu0 %v292
    %356 = vmatpush1.bf16.msra.mxu0 %v291
    %357 = vmatprep.subr.bf16.mxu0 %v294
    %358 = vmatpush1.bf16.msra.mxu0 %v293
    %359 = vmatprep.subr.bf16.mxu0 %v296
    %360 = vmatpush1.bf16.msra.mxu0 %v295
    %361 = vmatprep.subr.bf16.mxu0 %v298
    %362 = vmatpush1.bf16.msra.mxu0 %v297
    %363 = vmatprep.subr.bf16.mxu0 %v300
    %364 = vmatpush1.bf16.msra.mxu0 %v299
    %365 = vmatprep.subr.bf16.mxu0 %v302
    %366 = vmatpush1.bf16.msra.mxu0 %v301
    %367 = vmatprep.subr.bf16.mxu0 %v304
    %368 = vmatpush1.bf16.msra.mxu0 %v303
    %369 = vmatprep.subr.bf16.mxu0 %v306
    %370 = vmatpush1.bf16.msra.mxu0 %v305
    %371 = vmatprep.subr.bf16.mxu0 %v308
    %372 = vmatpush1.bf16.msra.mxu0 %v307
    %373 = vmatprep.subr.bf16.mxu0 %v310
    %374 = vmatpush1.bf16.msra.mxu0 %v309
    %375 = vmatprep.subr.bf16.mxu0 %v312
    %376 = vmatpush1.bf16.msra.mxu0 %v311
    %377 = vmatprep.subr.bf16.mxu0 %v314
    %378 = vmatpush1.bf16.msra.mxu0 %v313
    %379 = vmatprep.subr.bf16.mxu0 %v316
    %380 = vmatpush1.bf16.msra.mxu0 %v315
    %381 = vmatprep.subr.bf16.mxu0 %v318
    %382 = vmatpush1.bf16.msra.mxu0 %v317
    %383 = vmatprep.subr.bf16.mxu0 %v320
    %384 = vmatpush1.bf16.msra.mxu0 %v319
    %385 = vmatprep.mubr.bf16.mxu0 %v140
    %386 = vmatmul.mubr.bf16.gmra.mrb[0].mxu0 %v139
    %v387 = vpop.f32.mrb[0].mxu0
    %v388 = vadd.f32 %v186, %v387
    %v389 = vpop.f32.mrb[0].mxu0
    %v390 = vadd.f32 %v190, %v389
    %v391 = vpop.f32.mrb[0].mxu0
    %v392 = vpop.f32.mrb[0].mxu0
    %393 = vdwg.mxu0
    %v394 = vld [vmem:[#allocation10] sm:$0xff]
    %v395 = vld [vmem:[#allocation10 + $0x8] sm:$0xff]
    %v396 = vld [vmem:[#allocation10 + $0x10] sm:$0xff]
    %v397 = vld [vmem:[#allocation10 + $0x18] sm:$0xff]
    %v398 = vld [vmem:[#allocation10 + $0x20] sm:$0xff]
    %v399 = vld [vmem:[#allocation10 + $0x28] sm:$0xff]
    %v400 = vld [vmem:[#allocation10 + $0x30] sm:$0xff]
    %v401 = vld [vmem:[#allocation10 + $0x38] sm:$0xff]
    %v402 = vld [vmem:[#allocation10 + $0x40] sm:$0xff]
    %v403 = vld [vmem:[#allocation10 + $0x48] sm:$0xff]
    %v404 = vld [vmem:[#allocation10 + $0x50] sm:$0xff]
    %v405 = vld [vmem:[#allocation10 + $0x58] sm:$0xff]
    %v406 = vld [vmem:[#allocation10 + $0x60] sm:$0xff]
    %v407 = vld [vmem:[#allocation10 + $0x68] sm:$0xff]
    %v408 = vld [vmem:[#allocation10 + $0x70] sm:$0xff]
    %v409 = vld [vmem:[#allocation10 + $0x78] sm:$0xff]
    %v410 = vld [vmem:[#allocation10 + $0x80] sm:$0xff]
    %v411 = vld [vmem:[#allocation10 + $0x88] sm:$0xff]
    %v412 = vld [vmem:[#allocation10 + $0x90] sm:$0xff]
    %v413 = vld [vmem:[#allocation10 + $0x98] sm:$0xff]
    %v414 = vld [vmem:[#allocation10 + $0xa0] sm:$0xff]
    %v415 = vld [vmem:[#allocation10 + $0xa8] sm:$0xff]
    %v416 = vld [vmem:[#allocation10 + $0xb0] sm:$0xff]
    %v417 = vld [vmem:[#allocation10 + $0xb8] sm:$0xff]
    %v418 = vld [vmem:[#allocation10 + $0xc0] sm:$0xff]
    %v419 = vld [vmem:[#allocation10 + $0xc8] sm:$0xff]
    %v420 = vld [vmem:[#allocation10 + $0xd0] sm:$0xff]
    %v421 = vld [vmem:[#allocation10 + $0xd8] sm:$0xff]
    %v422 = vld [vmem:[#allocation10 + $0xe0] sm:$0xff]
    %v423 = vld [vmem:[#allocation10 + $0xe8] sm:$0xff]
    %v424 = vld [vmem:[#allocation10 + $0xf0] sm:$0xff]
    %v425 = vld [vmem:[#allocation10 + $0xf8] sm:$0xff]
    %v426 = vld [vmem:[%s8] sm:$0x3]
    %v428 = vlaneseq
    %v429 = vshrl.u32 %v428, 7
    %v430 = vsub.s32 0, %v429
    %v431 = vrot.slane %v426, %v430
    %v432 = vlaneseq
    %v433 = vshrl.u32 %v432, 7
    %v434 = vsub.s32 1, %v433
    %v435 = vrot.slane %v426, %v434
    %v470 = vunpack.c.l.b16 %v394
    %v471 = vunpack.c.h.b16 %v394
    %v472 = vunpack.c.l.b16 %v395
    %v473 = vunpack.c.h.b16 %v395
    %v474 = vunpack.c.l.b16 %v396
    %v475 = vunpack.c.h.b16 %v396
    %v476 = vunpack.c.l.b16 %v397
    %v477 = vunpack.c.h.b16 %v397
    %v478 = vunpack.c.l.b16 %v398
    %v479 = vunpack.c.h.b16 %v398
    %v480 = vunpack.c.l.b16 %v399
    %v481 = vunpack.c.h.b16 %v399
    %v482 = vunpack.c.l.b16 %v400
    %v483 = vunpack.c.h.b16 %v400
    %v484 = vunpack.c.l.b16 %v401
    %v485 = vunpack.c.h.b16 %v401
    %v486 = vunpack.c.l.b16 %v402
    %v487 = vunpack.c.h.b16 %v402
    %v488 = vunpack.c.l.b16 %v403
    %v489 = vunpack.c.h.b16 %v403
    %v490 = vunpack.c.l.b16 %v404
    %v491 = vunpack.c.h.b16 %v404
    %v492 = vunpack.c.l.b16 %v405
    %v493 = vunpack.c.h.b16 %v405
    %v494 = vunpack.c.l.b16 %v406
    %v495 = vunpack.c.h.b16 %v406
    %v496 = vunpack.c.l.b16 %v407
    %v497 = vunpack.c.h.b16 %v407
    %v498 = vunpack.c.l.b16 %v408
    %v499 = vunpack.c.h.b16 %v408
    %v500 = vunpack.c.l.b16 %v409
    %v501 = vunpack.c.h.b16 %v409
    %v502 = vunpack.c.l.b16 %v410
    %v503 = vunpack.c.h.b16 %v410
    %v504 = vunpack.c.l.b16 %v411
    %v505 = vunpack.c.h.b16 %v411
    %v506 = vunpack.c.l.b16 %v412
    %v507 = vunpack.c.h.b16 %v412
    %v508 = vunpack.c.l.b16 %v413
    %v509 = vunpack.c.h.b16 %v413
    %v510 = vunpack.c.l.b16 %v414
    %v511 = vunpack.c.h.b16 %v414
    %v512 = vunpack.c.l.b16 %v415
    %v513 = vunpack.c.h.b16 %v415
    %v514 = vunpack.c.l.b16 %v416
    %v515 = vunpack.c.h.b16 %v416
    %v516 = vunpack.c.l.b16 %v417
    %v517 = vunpack.c.h.b16 %v417
    %v518 = vunpack.c.l.b16 %v418
    %v519 = vunpack.c.h.b16 %v418
    %v520 = vunpack.c.l.b16 %v419
    %v521 = vunpack.c.h.b16 %v419
    %v522 = vunpack.c.l.b16 %v420
    %v523 = vunpack.c.h.b16 %v420
    %v524 = vunpack.c.l.b16 %v421
    %v525 = vunpack.c.h.b16 %v421
    %v526 = vunpack.c.l.b16 %v422
    %v527 = vunpack.c.h.b16 %v422
    %v528 = vunpack.c.l.b16 %v423
    %v529 = vunpack.c.h.b16 %v423
    %v530 = vunpack.c.l.b16 %v424
    %v531 = vunpack.c.h.b16 %v424
    %v532 = vunpack.c.l.b16 %v425
    %v533 = vunpack.c.h.b16 %v425
    %v534 = vpack.c.b16 %v472, %v470
    %v535 = vpack.c.b16 %v473, %v471
    %v536 = vpack.c.b16 %v476, %v474
    %v537 = vpack.c.b16 %v477, %v475
    %v538 = vpack.c.b16 %v480, %v478
    %v539 = vpack.c.b16 %v481, %v479
    %v540 = vpack.c.b16 %v484, %v482
    %v541 = vpack.c.b16 %v485, %v483
    %v542 = vpack.c.b16 %v488, %v486
    %v543 = vpack.c.b16 %v489, %v487
    %v544 = vpack.c.b16 %v492, %v490
    %v545 = vpack.c.b16 %v493, %v491
    %v546 = vpack.c.b16 %v496, %v494
    %v547 = vpack.c.b16 %v497, %v495
    %v548 = vpack.c.b16 %v500, %v498
    %v549 = vpack.c.b16 %v501, %v499
    %v550 = vpack.c.b16 %v504, %v502
    %v551 = vpack.c.b16 %v505, %v503
    %v552 = vpack.c.b16 %v508, %v506
    %v553 = vpack.c.b16 %v509, %v507
    %v554 = vpack.c.b16 %v512, %v510
    %v555 = vpack.c.b16 %v513, %v511
    %v556 = vpack.c.b16 %v516, %v514
    %v557 = vpack.c.b16 %v517, %v515
    %v558 = vpack.c.b16 %v520, %v518
    %v559 = vpack.c.b16 %v521, %v519
    %v560 = vpack.c.b16 %v524, %v522
    %v561 = vpack.c.b16 %v525, %v523
    %v562 = vpack.c.b16 %v528, %v526
    %v563 = vpack.c.b16 %v529, %v527
    %v564 = vpack.c.b16 %v532, %v530
    %v565 = vpack.c.b16 %v533, %v531
    %598 = vmatprep.subr.bf16.mxu0 %v535
    %599 = vmatpush1.bf16.msra.mxu0 %v534
    %600 = vmatprep.subr.bf16.mxu0 %v537
    %601 = vmatpush1.bf16.msra.mxu0 %v536
    %602 = vmatprep.subr.bf16.mxu0 %v539
    %603 = vmatpush1.bf16.msra.mxu0 %v538
    %604 = vmatprep.subr.bf16.mxu0 %v541
    %605 = vmatpush1.bf16.msra.mxu0 %v540
    %606 = vmatprep.subr.bf16.mxu0 %v543
    %607 = vmatpush1.bf16.msra.mxu0 %v542
    %608 = vmatprep.subr.bf16.mxu0 %v545
    %609 = vmatpush1.bf16.msra.mxu0 %v544
    %610 = vmatprep.subr.bf16.mxu0 %v547
    %611 = vmatpush1.bf16.msra.mxu0 %v546
    %612 = vmatprep.subr.bf16.mxu0 %v549
    %613 = vmatpush1.bf16.msra.mxu0 %v548
    %614 = vmatprep.subr.bf16.mxu0 %v551
    %615 = vmatpush1.bf16.msra.mxu0 %v550
    %616 = vmatprep.subr.bf16.mxu0 %v553
    %617 = vmatpush1.bf16.msra.mxu0 %v552
    %618 = vmatprep.subr.bf16.mxu0 %v555
    %619 = vmatpush1.bf16.msra.mxu0 %v554
    %620 = vmatprep.subr.bf16.mxu0 %v557
    %621 = vmatpush1.bf16.msra.mxu0 %v556
    %622 = vmatprep.subr.bf16.mxu0 %v559
    %623 = vmatpush1.bf16.msra.mxu0 %v558
    %624 = vmatprep.subr.bf16.mxu0 %v561
    %625 = vmatpush1.bf16.msra.mxu0 %v560
    %626 = vmatprep.subr.bf16.mxu0 %v563
    %627 = vmatpush1.bf16.msra.mxu0 %v562
    %628 = vmatprep.subr.bf16.mxu0 %v565
    %629 = vmatpush1.bf16.msra.mxu0 %v564
    %630 = vmatprep.mubr.bf16.mxu0 %v144
    %631 = vmatmul.mubr.bf16.gmra.mrb[0].mxu0 %v143
    %v632 = vpop.f32.mrb[0].mxu0
    %v633 = vadd.f32 %v431, %v632
    %v634 = vpop.f32.mrb[0].mxu0
    %v635 = vadd.f32 %v435, %v634
    %v636 = vpop.f32.mrb[0].mxu0
    %v637 = vpop.f32.mrb[0].mxu0
    %638 = vdwg.mxu0
    %v639 = vld [vmem:[#allocation11] sm:$0xff]
    %v640 = vld [vmem:[#allocation11 + $0x8] sm:$0xff]
    %v641 = vld [vmem:[#allocation11 + $0x10] sm:$0xff]
    %v642 = vld [vmem:[#allocation11 + $0x18] sm:$0xff]
    %v643 = vld [vmem:[#allocation11 + $0x20] sm:$0xff]
    %v644 = vld [vmem:[#allocation11 + $0x28] sm:$0xff]
    %v645 = vld [vmem:[#allocation11 + $0x30] sm:$0xff]
    %v646 = vld [vmem:[#allocation11 + $0x38] sm:$0xff]
    %v647 = vld [vmem:[#allocation11 + $0x40] sm:$0xff]
    %v648 = vld [vmem:[#allocation11 + $0x48] sm:$0xff]
    %v649 = vld [vmem:[#allocation11 + $0x50] sm:$0xff]
    %v650 = vld [vmem:[#allocation11 + $0x58] sm:$0xff]
    %v651 = vld [vmem:[#allocation11 + $0x60] sm:$0xff]
    %v652 = vld [vmem:[#allocation11 + $0x68] sm:$0xff]
    %v653 = vld [vmem:[#allocation11 + $0x70] sm:$0xff]
    %v654 = vld [vmem:[#allocation11 + $0x78] sm:$0xff]
    %v655 = vld [vmem:[#allocation11 + $0x80] sm:$0xff]
    %v656 = vld [vmem:[#allocation11 + $0x88] sm:$0xff]
    %v657 = vld [vmem:[#allocation11 + $0x90] sm:$0xff]
    %v658 = vld [vmem:[#allocation11 + $0x98] sm:$0xff]
    %v659 = vld [vmem:[#allocation11 + $0xa0] sm:$0xff]
    %v660 = vld [vmem:[#allocation11 + $0xa8] sm:$0xff]
    %v661 = vld [vmem:[#allocation11 + $0xb0] sm:$0xff]
    %v662 = vld [vmem:[#allocation11 + $0xb8] sm:$0xff]
    %v663 = vld [vmem:[#allocation11 + $0xc0] sm:$0xff]
    %v664 = vld [vmem:[#allocation11 + $0xc8] sm:$0xff]
    %v665 = vld [vmem:[#allocation11 + $0xd0] sm:$0xff]
    %v666 = vld [vmem:[#allocation11 + $0xd8] sm:$0xff]
    %v667 = vld [vmem:[#allocation11 + $0xe0] sm:$0xff]
    %v668 = vld [vmem:[#allocation11 + $0xe8] sm:$0xff]
    %v669 = vld [vmem:[#allocation11 + $0xf0] sm:$0xff]
    %v670 = vld [vmem:[#allocation11 + $0xf8] sm:$0xff]
    %v671 = vld [vmem:[%s9] sm:$0x3]
    %v673 = vlaneseq
    %v674 = vshrl.u32 %v673, 7
    %v675 = vsub.s32 0, %v674
    %v676 = vrot.slane %v671, %v675
    %v677 = vlaneseq
    %v678 = vshrl.u32 %v677, 7
    %v679 = vsub.s32 1, %v678
    %v680 = vrot.slane %v671, %v679
    %v715 = vunpack.c.l.b16 %v639
    %v716 = vunpack.c.h.b16 %v639
    %v717 = vunpack.c.l.b16 %v640
    %v718 = vunpack.c.h.b16 %v640
    %v719 = vunpack.c.l.b16 %v641
    %v720 = vunpack.c.h.b16 %v641
    %v721 = vunpack.c.l.b16 %v642
    %v722 = vunpack.c.h.b16 %v642
    %v723 = vunpack.c.l.b16 %v643
    %v724 = vunpack.c.h.b16 %v643
    %v725 = vunpack.c.l.b16 %v644
    %v726 = vunpack.c.h.b16 %v644
    %v727 = vunpack.c.l.b16 %v645
    %v728 = vunpack.c.h.b16 %v645
    %v729 = vunpack.c.l.b16 %v646
    %v730 = vunpack.c.h.b16 %v646
    %v731 = vunpack.c.l.b16 %v647
    %v732 = vunpack.c.h.b16 %v647
    %v733 = vunpack.c.l.b16 %v648
    %v734 = vunpack.c.h.b16 %v648
    %v735 = vunpack.c.l.b16 %v649
    %v736 = vunpack.c.h.b16 %v649
    %v737 = vunpack.c.l.b16 %v650
    %v738 = vunpack.c.h.b16 %v650
    %v739 = vunpack.c.l.b16 %v651
    %v740 = vunpack.c.h.b16 %v651
    %v741 = vunpack.c.l.b16 %v652
    %v742 = vunpack.c.h.b16 %v652
    %v743 = vunpack.c.l.b16 %v653
    %v744 = vunpack.c.h.b16 %v653
    %v745 = vunpack.c.l.b16 %v654
    %v746 = vunpack.c.h.b16 %v654
    %v747 = vunpack.c.l.b16 %v655
    %v748 = vunpack.c.h.b16 %v655
    %v749 = vunpack.c.l.b16 %v656
    %v750 = vunpack.c.h.b16 %v656
    %v751 = vunpack.c.l.b16 %v657
    %v752 = vunpack.c.h.b16 %v657
    %v753 = vunpack.c.l.b16 %v658
    %v754 = vunpack.c.h.b16 %v658
    %v755 = vunpack.c.l.b16 %v659
    %v756 = vunpack.c.h.b16 %v659
    %v757 = vunpack.c.l.b16 %v660
    %v758 = vunpack.c.h.b16 %v660
    %v759 = vunpack.c.l.b16 %v661
    %v760 = vunpack.c.h.b16 %v661
    %v761 = vunpack.c.l.b16 %v662
    %v762 = vunpack.c.h.b16 %v662
    %v763 = vunpack.c.l.b16 %v663
    %v764 = vunpack.c.h.b16 %v663
    %v765 = vunpack.c.l.b16 %v664
    %v766 = vunpack.c.h.b16 %v664
    %v767 = vunpack.c.l.b16 %v665
    %v768 = vunpack.c.h.b16 %v665
    %v769 = vunpack.c.l.b16 %v666
    %v770 = vunpack.c.h.b16 %v666
    %v771 = vunpack.c.l.b16 %v667
    %v772 = vunpack.c.h.b16 %v667
    %v773 = vunpack.c.l.b16 %v668
    %v774 = vunpack.c.h.b16 %v668
    %v775 = vunpack.c.l.b16 %v669
    %v776 = vunpack.c.h.b16 %v669
    %v777 = vunpack.c.l.b16 %v670
    %v778 = vunpack.c.h.b16 %v670
    %v779 = vpack.c.b16 %v717, %v715
    %v780 = vpack.c.b16 %v718, %v716
    %v781 = vpack.c.b16 %v721, %v719
    %v782 = vpack.c.b16 %v722, %v720
    %v783 = vpack.c.b16 %v725, %v723
    %v784 = vpack.c.b16 %v726, %v724
    %v785 = vpack.c.b16 %v729, %v727
    %v786 = vpack.c.b16 %v730, %v728
    %v787 = vpack.c.b16 %v733, %v731
    %v788 = vpack.c.b16 %v734, %v732
    %v789 = vpack.c.b16 %v737, %v735
    %v790 = vpack.c.b16 %v738, %v736
    %v791 = vpack.c.b16 %v741, %v739
    %v792 = vpack.c.b16 %v742, %v740
    %v793 = vpack.c.b16 %v745, %v743
    %v794 = vpack.c.b16 %v746, %v744
    %v795 = vpack.c.b16 %v749, %v747
    %v796 = vpack.c.b16 %v750, %v748
    %v797 = vpack.c.b16 %v753, %v751
    %v798 = vpack.c.b16 %v754, %v752
    %v799 = vpack.c.b16 %v757, %v755
    %v800 = vpack.c.b16 %v758, %v756
    %v801 = vpack.c.b16 %v761, %v759
    %v802 = vpack.c.b16 %v762, %v760
    %v803 = vpack.c.b16 %v765, %v763
    %v804 = vpack.c.b16 %v766, %v764
    %v805 = vpack.c.b16 %v769, %v767
    %v806 = vpack.c.b16 %v770, %v768
    %v807 = vpack.c.b16 %v773, %v771
    %v808 = vpack.c.b16 %v774, %v772
    %v809 = vpack.c.b16 %v777, %v775
    %v810 = vpack.c.b16 %v778, %v776
    %843 = vmatprep.subr.bf16.mxu0 %v780
    %844 = vmatpush1.bf16.msra.mxu0 %v779
    %845 = vmatprep.subr.bf16.mxu0 %v782
    %846 = vmatpush1.bf16.msra.mxu0 %v781
    %847 = vmatprep.subr.bf16.mxu0 %v784
    %848 = vmatpush1.bf16.msra.mxu0 %v783
    %849 = vmatprep.subr.bf16.mxu0 %v786
    %850 = vmatpush1.bf16.msra.mxu0 %v785
    %851 = vmatprep.subr.bf16.mxu0 %v788
    %852 = vmatpush1.bf16.msra.mxu0 %v787
    %853 = vmatprep.subr.bf16.mxu0 %v790
    %854 = vmatpush1.bf16.msra.mxu0 %v789
    %855 = vmatprep.subr.bf16.mxu0 %v792
    %856 = vmatpush1.bf16.msra.mxu0 %v791
    %857 = vmatprep.subr.bf16.mxu0 %v794
    %858 = vmatpush1.bf16.msra.mxu0 %v793
    %859 = vmatprep.subr.bf16.mxu0 %v796
    %860 = vmatpush1.bf16.msra.mxu0 %v795
    %861 = vmatprep.subr.bf16.mxu0 %v798
    %862 = vmatpush1.bf16.msra.mxu0 %v797
    %863 = vmatprep.subr.bf16.mxu0 %v800
    %864 = vmatpush1.bf16.msra.mxu0 %v799
    %865 = vmatprep.subr.bf16.mxu0 %v802
    %866 = vmatpush1.bf16.msra.mxu0 %v801
    %867 = vmatprep.subr.bf16.mxu0 %v804
    %868 = vmatpush1.bf16.msra.mxu0 %v803
    %869 = vmatprep.subr.bf16.mxu0 %v806
    %870 = vmatpush1.bf16.msra.mxu0 %v805
    %871 = vmatprep.subr.bf16.mxu0 %v808
    %872 = vmatpush1.bf16.msra.mxu0 %v807
    %873 = vmatprep.subr.bf16.mxu0 %v810
    %874 = vmatpush1.bf16.msra.mxu0 %v809
    %875 = vmatprep.mubr.bf16.mxu0 %v148
    %876 = vmatmul.mubr.bf16.gmra.mrb[0].mxu0 %v147
    %v877 = vpop.f32.mrb[0].mxu0
    %v878 = vadd.f32 %v676, %v877
    %v879 = vpop.f32.mrb[0].mxu0
    %v880 = vadd.f32 %v680, %v879
    %v881 = vpop.f32.mrb[0].mxu0
    %v882 = vpop.f32.mrb[0].mxu0
    %883 = vdwg.mxu0
    %v884 = vpack.c.bf16 %v388, %v388
    %v885 = vpack.c.bf16 %v390, %v390
    %v886 = vpack.c.bf16 %v633, %v633
    %v887 = vpack.c.bf16 %v635, %v635
    %v888 = vpack.c.bf16 %v878, %v878
    %v889 = vpack.c.bf16 %v880, %v880
    %vm890 = vcmask 523264
    %v892 = vsel %vm890, %v884, 0
    %v895 = vsel %vm890, %v886, 0
    %897 = vmatprep.subr.bf16.mxu0 0
    %898 = vmatpush1.bf16.xpose.msra.mxu0 %v895
    %899 = vmatprep.subr.bf16.mxu0 0
    %900 = vmatpush1.bf16.xpose.msra.mxu0 0
    %901 = vmatprep.subr.bf16.mxu0 0
    %902 = vmatpush1.bf16.xpose.msra.mxu0 0
    %903 = vmatprep.subr.bf16.mxu0 0
    %904 = vmatpush1.bf16.xpose.msra.mxu0 0
    %905 = vmatprep.subr.bf16.mxu0 0
    %906 = vmatpush1.bf16.xpose.msra.mxu0 0
    %907 = vmatprep.subr.bf16.mxu0 0
    %908 = vmatpush1.bf16.xpose.msra.mxu0 0
    %909 = vmatprep.subr.bf16.mxu0 0
    %910 = vmatpush1.bf16.xpose.msra.mxu0 0
    %911 = vmatprep.subr.bf16.mxu0 0
    %912 = vmatpush1.bf16.xpose.msra.mxu0 0
    %913 = vmatprep.subr.bf16.mxu0 0
    %914 = vmatpush1.bf16.xpose.msra.mxu0 0
    %915 = vmatprep.subr.bf16.mxu0 0
    %916 = vmatpush1.bf16.xpose.msra.mxu0 0
    %917 = vmatprep.subr.bf16.mxu0 0
    %918 = vmatpush1.bf16.xpose.msra.mxu0 0
    %919 = vmatprep.subr.bf16.mxu0 0
    %920 = vmatpush1.bf16.xpose.msra.mxu0 0
    %921 = vmatprep.subr.bf16.mxu0 0
    %922 = vmatpush1.bf16.xpose.msra.mxu0 0
    %923 = vmatprep.subr.bf16.mxu0 0
    %924 = vmatpush1.bf16.xpose.msra.mxu0 0
    %925 = vmatprep.subr.bf16.mxu0 0
    %926 = vmatpush1.bf16.xpose.msra.mxu0 0
    %927 = vmatprep.subr.bf16.mxu0 0
    %928 = vmatpush1.bf16.xpose.msra.mxu0 0
    %929 = vmatprep.mubr.bf16.mxu0 0
    %930 = vmatmul.mubr.bf16.gmra.mrb[0].mxu0 %v892
    %v931 = vpop.f32.mrb[0].mxu0
    %v932 = vadd.f32 0.0, %v931
    %v933 = vpop.f32.mrb[0].mxu0
    %v934 = vpop.f32.mrb[0].mxu0
    %v935 = vpop.f32.mrb[0].mxu0
    %936 = vdwg.mxu0
    %938 = vrot.lane.b32.xlu0 %v884, 64
    %v939 = vpop.permute.xlu0 %938
    %941 = vrot.lane.b32.xlu0 %v886, 64
    %v942 = vpop.permute.xlu0 %941
    %v944 = vsel %vm890, %v939, 0
    %v947 = vsel %vm890, %v942, 0
    %949 = vmatprep.subr.bf16.mxu0 0
    %950 = vmatpush1.bf16.xpose.msra.mxu0 %v947
    %951 = vmatprep.subr.bf16.mxu0 0
    %952 = vmatpush1.bf16.xpose.msra.mxu0 0
    %953 = vmatprep.subr.bf16.mxu0 0
    %954 = vmatpush1.bf16.xpose.msra.mxu0 0
    %955 = vmatprep.subr.bf16.mxu0 0
    %956 = vmatpush1.bf16.xpose.msra.mxu0 0
    %957 = vmatprep.subr.bf16.mxu0 0
    %958 = vmatpush1.bf16.xpose.msra.mxu0 0
    %959 = vmatprep.subr.bf16.mxu0 0
    %960 = vmatpush1.bf16.xpose.msra.mxu0 0
    %961 = vmatprep.subr.bf16.mxu0 0
    %962 = vmatpush1.bf16.xpose.msra.mxu0 0
    %963 = vmatprep.subr.bf16.mxu0 0
    %964 = vmatpush1.bf16.xpose.msra.mxu0 0
    %965 = vmatprep.subr.bf16.mxu0 0
    %966 = vmatpush1.bf16.xpose.msra.mxu0 0
    %967 = vmatprep.subr.bf16.mxu0 0
    %968 = vmatpush1.bf16.xpose.msra.mxu0 0
    %969 = vmatprep.subr.bf16.mxu0 0
    %970 = vmatpush1.bf16.xpose.msra.mxu0 0
    %971 = vmatprep.subr.bf16.mxu0 0
    %972 = vmatpush1.bf16.xpose.msra.mxu0 0
    %973 = vmatprep.subr.bf16.mxu0 0
    %974 = vmatpush1.bf16.xpose.msra.mxu0 0
    %975 = vmatprep.subr.bf16.mxu0 0
    %976 = vmatpush1.bf16.xpose.msra.mxu0 0
    %977 = vmatprep.subr.bf16.mxu0 0
    %978 = vmatpush1.bf16.xpose.msra.mxu0 0
    %979 = vmatprep.subr.bf16.mxu0 0
    %980 = vmatpush1.bf16.xpose.msra.mxu0 0
    %981 = vmatprep.mubr.bf16.mxu0 0
    %982 = vmatmul.mubr.bf16.gmra.mrb[0].mxu0 %v944
    %v983 = vpop.f32.mrb[0].mxu0
    %v984 = vadd.f32 0.0, %v983
    %v985 = vpop.f32.mrb[0].mxu0
    %v986 = vpop.f32.mrb[0].mxu0
    %v987 = vpop.f32.mrb[0].mxu0
    %988 = vdwg.mxu0
    %v990 = vsel %vm890, %v885, 0
    %v993 = vsel %vm890, %v887, 0
    %995 = vmatprep.subr.bf16.mxu0 0
    %996 = vmatpush1.bf16.xpose.msra.mxu0 %v993
    %997 = vmatprep.subr.bf16.mxu0 0
    %998 = vmatpush1.bf16.xpose.msra.mxu0 0
    %999 = vmatprep.subr.bf16.mxu0 0
    %1000 = vmatpush1.bf16.xpose.msra.mxu0 0
    %1001 = vmatprep.subr.bf16.mxu0 0
    %1002 = vmatpush1.bf16.xpose.msra.mxu0 0
    %1003 = vmatprep.subr.bf16.mxu0 0
    %1004 = vmatpush1.bf16.xpose.msra.mxu0 0
    %1005 = vmatprep.subr.bf16.mxu0 0
    %1006 = vmatpush1.bf16.xpose.msra.mxu0 0
    %1007 = vmatprep.subr.bf16.mxu0 0
    %1008 = vmatpush1.bf16.xpose.msra.mxu0 0
    %1009 = vmatprep.subr.bf16.mxu0 0
    %1010 = vmatpush1.bf16.xpose.msra.mxu0 0
    %1011 = vmatprep.subr.bf16.mxu0 0
    %1012 = vmatpush1.bf16.xpose.msra.mxu0 0
    %1013 = vmatprep.subr.bf16.mxu0 0
    %1014 = vmatpush1.bf16.xpose.msra.mxu0 0
    %1015 = vmatprep.subr.bf16.mxu0 0
    %1016 = vmatpush1.bf16.xpose.msra.mxu0 0
    %1017 = vmatprep.subr.bf16.mxu0 0
    %1018 = vmatpush1.bf16.xpose.msra.mxu0 0
    %1019 = vmatprep.subr.bf16.mxu0 0
    %1020 = vmatpush1.bf16.xpose.msra.mxu0 0
    %1021 = vmatprep.subr.bf16.mxu0 0
    %1022 = vmatpush1.bf16.xpose.msra.mxu0 0
    %1023 = vmatprep.subr.bf16.mxu0 0
    %1024 = vmatpush1.bf16.xpose.msra.mxu0 0
    %1025 = vmatprep.subr.bf16.mxu0 0
    %1026 = vmatpush1.bf16.xpose.msra.mxu0 0
    %1027 = vmatprep.mubr.bf16.mxu0 0
    %1028 = vmatmul.mubr.bf16.gmra.mrb[0].mxu0 %v990
    %v1029 = vpop.f32.mrb[0].mxu0
    %v1030 = vadd.f32 0.0, %v1029
    %v1031 = vpop.f32.mrb[0].mxu0
    %v1032 = vpop.f32.mrb[0].mxu0
    %v1033 = vpop.f32.mrb[0].mxu0
    %1034 = vdwg.mxu0
    %1036 = vrot.lane.b32.xlu0 %v885, 64
    %v1037 = vpop.permute.xlu0 %1036
    %1039 = vrot.lane.b32.xlu0 %v887, 64
    %v1040 = vpop.permute.xlu0 %1039
    %v1042 = vsel %vm890, %v1037, 0
    %v1045 = vsel %vm890, %v1040, 0
    %1047 = vmatprep.subr.bf16.mxu0 0
    %1048 = vmatpush1.bf16.xpose.msra.mxu0 %v1045
    %1049 = vmatprep.subr.bf16.mxu0 0
    %1050 = vmatpush1.bf16.xpose.msra.mxu0 0
    %1051 = vmatprep.subr.bf16.mxu0 0
    %1052 = vmatpush1.bf16.xpose.msra.mxu0 0
    %1053 = vmatprep.subr.bf16.mxu0 0
    %1054 = vmatpush1.bf16.xpose.msra.mxu0 0
    %1055 = vmatprep.subr.bf16.mxu0 0
    %1056 = vmatpush1.bf16.xpose.msra.mxu0 0
    %1057 = vmatprep.subr.bf16.mxu0 0
    %1058 = vmatpush1.bf16.xpose.msra.mxu0 0
    %1059 = vmatprep.subr.bf16.mxu0 0
    %1060 = vmatpush1.bf16.xpose.msra.mxu0 0
    %1061 = vmatprep.subr.bf16.mxu0 0
    %1062 = vmatpush1.bf16.xpose.msra.mxu0 0
    %1063 = vmatprep.subr.bf16.mxu0 0
    %1064 = vmatpush1.bf16.xpose.msra.mxu0 0
    %1065 = vmatprep.subr.bf16.mxu0 0
    %1066 = vmatpush1.bf16.xpose.msra.mxu0 0
    %1067 = vmatprep.subr.bf16.mxu0 0
    %1068 = vmatpush1.bf16.xpose.msra.mxu0 0
    %1069 = vmatprep.subr.bf16.mxu0 0
    %1070 = vmatpush1.bf16.xpose.msra.mxu0 0
    %1071 = vmatprep.subr.bf16.mxu0 0
    %1072 = vmatpush1.bf16.xpose.msra.mxu0 0
    %1073 = vmatprep.subr.bf16.mxu0 0
    %1074 = vmatpush1.bf16.xpose.msra.mxu0 0
    %1075 = vmatprep.subr.bf16.mxu0 0
    %1076 = vmatpush1.bf16.xpose.msra.mxu0 0
    %1077 = vmatprep.subr.bf16.mxu0 0
    %1078 = vmatpush1.bf16.xpose.msra.mxu0 0
    %1079 = vmatprep.mubr.bf16.mxu0 0
    %1080 = vmatmul.mubr.bf16.gmra.mrb[0].mxu0 %v1042
    %v1081 = vpop.f32.mrb[0].mxu0
    %v1082 = vadd.f32 0.0, %v1081
    %v1083 = vpop.f32.mrb[0].mxu0
    %v1084 = vpop.f32.mrb[0].mxu0
    %v1085 = vpop.f32.mrb[0].mxu0
    %1086 = vdwg.mxu0
    %v1087 = vmul.f32 %v932, 0.25
    %v1088 = vmul.f32 %v984, 0.25
    %v1089 = vmul.f32 %v1030, 0.25
    %v1090 = vmul.f32 %v1082, 0.25
    %vm1091 = vcmask 64512
    %v1092 = vsel %vm1091, %v1087, -inf
    %1093 = vmax.xlane.f32.xlu0 %v1092
    %v1094 = vpop.xlane.xlu0 %1093
    %v1095 = vsel %vm1091, %v1088, -inf
    %1096 = vmax.xlane.f32.xlu0 %v1095
    %v1097 = vpop.xlane.xlu0 %1096
    %v1098 = vsel %vm1091, %v1089, -inf
    %1099 = vmax.xlane.f32.xlu0 %v1098
    %v1100 = vpop.xlane.xlu0 %1099
    %v1101 = vsel %vm1091, %v1090, -inf
    %1102 = vmax.xlane.f32.xlu0 %v1101
    %v1103 = vpop.xlane.xlu0 %1102
    %v1104 = vsub.f32 %v1087, %v1094
    %v1105 = vsub.f32 %v1088, %v1097
    %v1106 = vsub.f32 %v1089, %v1100
    %v1107 = vsub.f32 %v1090, %v1103
    %v1108 = vmul.f32 %v1104, 1.442695
    %v1109 = vpow.pop %v1108
    %v1110 = vmul.f32 %v1105, 1.442695
    %v1111 = vpow.pop %v1110
    %v1112 = vmul.f32 %v1106, 1.442695
    %v1113 = vpow.pop %v1112
    %v1114 = vmul.f32 %v1107, 1.442695
    %v1115 = vpow.pop %v1114
    %v1116 = vsel %vm1091, %v1109, 0.0
    %1117 = vadd.xlane.f32.xlu0 %v1116
    %v1118 = vpop.xlane.xlu0 %1117
    %v1119 = vsel %vm1091, %v1111, 0.0
    %1120 = vadd.xlane.f32.xlu0 %v1119
    %v1121 = vpop.xlane.xlu0 %1120
    %v1122 = vsel %vm1091, %v1113, 0.0
    %1123 = vadd.xlane.f32.xlu0 %v1122
    %v1124 = vpop.xlane.xlu0 %1123
    %v1125 = vsel %vm1091, %v1115, 0.0
    %1126 = vadd.xlane.f32.xlu0 %v1125
    %v1127 = vpop.xlane.xlu0 %1126
    %v1128 = vrcp.pop %v1118
    %v1129 = vmul.f32 %v1109, %v1128
    %v1130 = vrcp.pop %v1121
    %v1131 = vmul.f32 %v1111, %v1130
    %v1132 = vrcp.pop %v1124
    %v1133 = vmul.f32 %v1113, %v1132
    %v1134 = vrcp.pop %v1127
    %v1135 = vmul.f32 %v1115, %v1134
    %1136 = vst.msk [vmem:[%s14] sm:$0xff] %vm1091, %v1129
    %1137 = vst.msk [vmem:[%s14 + $0x8] sm:$0xff] %vm1091, %v1131
    %1138 = vst.msk [vmem:[%s14 + $0x10] sm:$0xff] %vm1091, %v1133
    %1139 = vst.msk [vmem:[%s14 + $0x18] sm:$0xff] %vm1091, %v1135
    %v1140 = vpack.c.bf16 %v1131, %v1129
    %v1141 = vpack.c.bf16 %v1135, %v1133
    %v1143 = vsel %vm1091, %v1140, 0
    %vm1145 = vcmask 1043456
    %v1147 = vsel %vm1145, %v888, 0
    %1149 = vmatprep.subr.bf16.mxu0 0
    %1150 = vmatpush1.bf16.msra.mxu0 %v1147
    %1151 = vmatprep.subr.bf16.mxu0 0
    %1152 = vmatpush1.bf16.msra.mxu0 0
    %1153 = vmatprep.subr.bf16.mxu0 0
    %1154 = vmatpush1.bf16.msra.mxu0 0
    %1155 = vmatprep.subr.bf16.mxu0 0
    %1156 = vmatpush1.bf16.msra.mxu0 0
    %1157 = vmatprep.subr.bf16.mxu0 0
    %1158 = vmatpush1.bf16.msra.mxu0 0
    %1159 = vmatprep.subr.bf16.mxu0 0
    %1160 = vmatpush1.bf16.msra.mxu0 0
    %1161 = vmatprep.subr.bf16.mxu0 0
    %1162 = vmatpush1.bf16.msra.mxu0 0
    %1163 = vmatprep.subr.bf16.mxu0 0
    %1164 = vmatpush1.bf16.msra.mxu0 0
    %1165 = vmatprep.subr.bf16.mxu0 0
    %1166 = vmatpush1.bf16.msra.mxu0 0
    %1167 = vmatprep.subr.bf16.mxu0 0
    %1168 = vmatpush1.bf16.msra.mxu0 0
    %1169 = vmatprep.subr.bf16.mxu0 0
    %1170 = vmatpush1.bf16.msra.mxu0 0
    %1171 = vmatprep.subr.bf16.mxu0 0
    %1172 = vmatpush1.bf16.msra.mxu0 0
    %1173 = vmatprep.subr.bf16.mxu0 0
    %1174 = vmatpush1.bf16.msra.mxu0 0
    %1175 = vmatprep.subr.bf16.mxu0 0
    %1176 = vmatpush1.bf16.msra.mxu0 0
    %1177 = vmatprep.subr.bf16.mxu0 0
    %1178 = vmatpush1.bf16.msra.mxu0 0
    %1179 = vmatprep.subr.bf16.mxu0 0
    %1180 = vmatpush1.bf16.msra.mxu0 0
    %1181 = vmatprep.mubr.bf16.mxu0 0
    %1182 = vmatmul.mubr.bf16.gmra.mrb[0].mxu0 %v1143
    %v1183 = vpop.f32.mrb[0].mxu0
    %v1184 = vadd.f32 0.0, %v1183
    %v1185 = vpop.f32.mrb[0].mxu0
    %v1186 = vpop.f32.mrb[0].mxu0
    %v1187 = vpop.f32.mrb[0].mxu0
    %1188 = vdwg.mxu0
    %v1190 = vrot.slane %v1140, 4
    %1192 = vrot.lane.b32.xlu0 %v888, 64
    %v1193 = vpop.permute.xlu0 %1192
    %v1195 = vsel %vm1091, %v1190, 0
    %v1198 = vsel %vm1145, %v1193, 0
    %1200 = vmatprep.subr.bf16.mxu0 0
    %1201 = vmatpush1.bf16.msra.mxu0 %v1198
    %1202 = vmatprep.subr.bf16.mxu0 0
    %1203 = vmatpush1.bf16.msra.mxu0 0
    %1204 = vmatprep.subr.bf16.mxu0 0
    %1205 = vmatpush1.bf16.msra.mxu0 0
    %1206 = vmatprep.subr.bf16.mxu0 0
    %1207 = vmatpush1.bf16.msra.mxu0 0
    %1208 = vmatprep.subr.bf16.mxu0 0
    %1209 = vmatpush1.bf16.msra.mxu0 0
    %1210 = vmatprep.subr.bf16.mxu0 0
    %1211 = vmatpush1.bf16.msra.mxu0 0
    %1212 = vmatprep.subr.bf16.mxu0 0
    %1213 = vmatpush1.bf16.msra.mxu0 0
    %1214 = vmatprep.subr.bf16.mxu0 0
    %1215 = vmatpush1.bf16.msra.mxu0 0
    %1216 = vmatprep.subr.bf16.mxu0 0
    %1217 = vmatpush1.bf16.msra.mxu0 0
    %1218 = vmatprep.subr.bf16.mxu0 0
    %1219 = vmatpush1.bf16.msra.mxu0 0
    %1220 = vmatprep.subr.bf16.mxu0 0
    %1221 = vmatpush1.bf16.msra.mxu0 0
    %1222 = vmatprep.subr.bf16.mxu0 0
    %1223 = vmatpush1.bf16.msra.mxu0 0
    %1224 = vmatprep.subr.bf16.mxu0 0
    %1225 = vmatpush1.bf16.msra.mxu0 0
    %1226 = vmatprep.subr.bf16.mxu0 0
    %1227 = vmatpush1.bf16.msra.mxu0 0
    %1228 = vmatprep.subr.bf16.mxu0 0
    %1229 = vmatpush1.bf16.msra.mxu0 0
    %1230 = vmatprep.subr.bf16.mxu0 0
    %1231 = vmatpush1.bf16.msra.mxu0 0
    %1232 = vmatprep.mubr.bf16.mxu0 0
    %1233 = vmatmul.mubr.bf16.gmra.mrb[0].mxu0 %v1195
    %v1234 = vpop.f32.mrb[0].mxu0
    %v1235 = vadd.f32 0.0, %v1234
    %v1236 = vpop.f32.mrb[0].mxu0
    %v1237 = vpop.f32.mrb[0].mxu0
    %v1238 = vpop.f32.mrb[0].mxu0
    %1239 = vdwg.mxu0
    %v1241 = vsel %vm1091, %v1141, 0
    %v1244 = vsel %vm1145, %v889, 0
    %1246 = vmatprep.subr.bf16.mxu0 0
    %1247 = vmatpush1.bf16.msra.mxu0 %v1244
    %1248 = vmatprep.subr.bf16.mxu0 0
    %1249 = vmatpush1.bf16.msra.mxu0 0
    %1250 = vmatprep.subr.bf16.mxu0 0
    %1251 = vmatpush1.bf16.msra.mxu0 0
    %1252 = vmatprep.subr.bf16.mxu0 0
    %1253 = vmatpush1.bf16.msra.mxu0 0
    %1254 = vmatprep.subr.bf16.mxu0 0
    %1255 = vmatpush1.bf16.msra.mxu0 0
    %1256 = vmatprep.subr.bf16.mxu0 0
    %1257 = vmatpush1.bf16.msra.mxu0 0
    %1258 = vmatprep.subr.bf16.mxu0 0
    %1259 = vmatpush1.bf16.msra.mxu0 0
    %1260 = vmatprep.subr.bf16.mxu0 0
    %1261 = vmatpush1.bf16.msra.mxu0 0
    %1262 = vmatprep.subr.bf16.mxu0 0
    %1263 = vmatpush1.bf16.msra.mxu0 0
    %1264 = vmatprep.subr.bf16.mxu0 0
    %1265 = vmatpush1.bf16.msra.mxu0 0
    %1266 = vmatprep.subr.bf16.mxu0 0
    %1267 = vmatpush1.bf16.msra.mxu0 0
    %1268 = vmatprep.subr.bf16.mxu0 0
    %1269 = vmatpush1.bf16.msra.mxu0 0
    %1270 = vmatprep.subr.bf16.mxu0 0
    %1271 = vmatpush1.bf16.msra.mxu0 0
    %1272 = vmatprep.subr.bf16.mxu0 0
    %1273 = vmatpush1.bf16.msra.mxu0 0
    %1274 = vmatprep.subr.bf16.mxu0 0
    %1275 = vmatpush1.bf16.msra.mxu0 0
    %1276 = vmatprep.subr.bf16.mxu0 0
    %1277 = vmatpush1.bf16.msra.mxu0 0
    %1278 = vmatprep.mubr.bf16.mxu0 0
    %1279 = vmatmul.mubr.bf16.gmra.mrb[0].mxu0 %v1241
    %v1280 = vpop.f32.mrb[0].mxu0
    %v1281 = vadd.f32 0.0, %v1280
    %v1282 = vpop.f32.mrb[0].mxu0
    %v1283 = vpop.f32.mrb[0].mxu0
    %v1284 = vpop.f32.mrb[0].mxu0
    %1285 = vdwg.mxu0
    %v1287 = vrot.slane %v1141, 4
    %1289 = vrot.lane.b32.xlu0 %v889, 64
    %v1290 = vpop.permute.xlu0 %1289
    %v1292 = vsel %vm1091, %v1287, 0
    %v1295 = vsel %vm1145, %v1290, 0
    %1297 = vmatprep.subr.bf16.mxu0 0
    %1298 = vmatpush1.bf16.msra.mxu0 %v1295
    %1299 = vmatprep.subr.bf16.mxu0 0
    %1300 = vmatpush1.bf16.msra.mxu0 0
    %1301 = vmatprep.subr.bf16.mxu0 0
    %1302 = vmatpush1.bf16.msra.mxu0 0
    %1303 = vmatprep.subr.bf16.mxu0 0
    %1304 = vmatpush1.bf16.msra.mxu0 0
    %1305 = vmatprep.subr.bf16.mxu0 0
    %1306 = vmatpush1.bf16.msra.mxu0 0
    %1307 = vmatprep.subr.bf16.mxu0 0
    %1308 = vmatpush1.bf16.msra.mxu0 0
    %1309 = vmatprep.subr.bf16.mxu0 0
    %1310 = vmatpush1.bf16.msra.mxu0 0
    %1311 = vmatprep.subr.bf16.mxu0 0
    %1312 = vmatpush1.bf16.msra.mxu0 0
    %1313 = vmatprep.subr.bf16.mxu0 0
    %1314 = vmatpush1.bf16.msra.mxu0 0
    %1315 = vmatprep.subr.bf16.mxu0 0
    %1316 = vmatpush1.bf16.msra.mxu0 0
    %1317 = vmatprep.subr.bf16.mxu0 0
    %1318 = vmatpush1.bf16.msra.mxu0 0
    %1319 = vmatprep.subr.bf16.mxu0 0
    %1320 = vmatpush1.bf16.msra.mxu0 0
    %1321 = vmatprep.subr.bf16.mxu0 0
    %1322 = vmatpush1.bf16.msra.mxu0 0
    %1323 = vmatprep.subr.bf16.mxu0 0
    %1324 = vmatpush1.bf16.msra.mxu0 0
    %1325 = vmatprep.subr.bf16.mxu0 0
    %1326 = vmatpush1.bf16.msra.mxu0 0
    %1327 = vmatprep.subr.bf16.mxu0 0
    %1328 = vmatpush1.bf16.msra.mxu0 0
    %1329 = vmatprep.mubr.bf16.mxu0 0
    %1330 = vmatmul.mubr.bf16.gmra.mrb[0].mxu0 %v1292
    %v1331 = vpop.f32.mrb[0].mxu0
    %v1332 = vadd.f32 0.0, %v1331
    %v1333 = vpop.f32.mrb[0].mxu0
    %v1334 = vpop.f32.mrb[0].mxu0
    %v1335 = vpop.f32.mrb[0].mxu0
    %1336 = vdwg.mxu0
    %1338 = vrot.lane.b32.xlu0 %v1235, 64
    %v1339 = vpop.permute.xlu0 %1338
    %1342 = vrot.lane.b32.xlu0 %v1332, 64
    %v1343 = vpop.permute.xlu0 %1342
    %v1345 = vsel %vm890, %v1184, %v1339
    %v1346 = vsel %vm890, %v1281, %v1343
    %v1347 = vpack.c.bf16 %v1345, %v1345
    %v1348 = vpack.c.bf16 %v1346, %v1346
    %v1349 = vld [vmem:[#allocation13] sm:$0xff]
    %v1350 = vld [vmem:[#allocation13 + $0x8] sm:$0xff]
    %v1351 = vld [vmem:[#allocation13 + $0x10] sm:$0xff]
    %v1352 = vld [vmem:[#allocation13 + $0x18] sm:$0xff]
    %v1353 = vld [vmem:[#allocation13 + $0x20] sm:$0xff]
    %v1354 = vld [vmem:[#allocation13 + $0x28] sm:$0xff]
    %v1355 = vld [vmem:[#allocation13 + $0x30] sm:$0xff]
    %v1356 = vld [vmem:[#allocation13 + $0x38] sm:$0xff]
    %v1357 = vld [vmem:[#allocation13 + $0x40] sm:$0xff]
    %v1358 = vld [vmem:[#allocation13 + $0x48] sm:$0xff]
    %v1359 = vld [vmem:[#allocation13 + $0x50] sm:$0xff]
    %v1360 = vld [vmem:[#allocation13 + $0x58] sm:$0xff]
    %v1361 = vld [vmem:[#allocation13 + $0x60] sm:$0xff]
    %v1362 = vld [vmem:[#allocation13 + $0x68] sm:$0xff]
    %v1363 = vld [vmem:[#allocation13 + $0x70] sm:$0xff]
    %v1364 = vld [vmem:[#allocation13 + $0x78] sm:$0xff]
    %v1365 = vld [vmem:[#allocation13 + $0x80] sm:$0xff]
    %v1366 = vld [vmem:[#allocation13 + $0x88] sm:$0xff]
    %v1367 = vld [vmem:[#allocation13 + $0x90] sm:$0xff]
    %v1368 = vld [vmem:[#allocation13 + $0x98] sm:$0xff]
    %v1369 = vld [vmem:[#allocation13 + $0xa0] sm:$0xff]
    %v1370 = vld [vmem:[#allocation13 + $0xa8] sm:$0xff]
    %v1371 = vld [vmem:[#allocation13 + $0xb0] sm:$0xff]
    %v1372 = vld [vmem:[#allocation13 + $0xb8] sm:$0xff]
    %v1373 = vld [vmem:[#allocation13 + $0xc0] sm:$0xff]
    %v1374 = vld [vmem:[#allocation13 + $0xc8] sm:$0xff]
    %v1375 = vld [vmem:[#allocation13 + $0xd0] sm:$0xff]
    %v1376 = vld [vmem:[#allocation13 + $0xd8] sm:$0xff]
    %v1377 = vld [vmem:[#allocation13 + $0xe0] sm:$0xff]
    %v1378 = vld [vmem:[#allocation13 + $0xe8] sm:$0xff]
    %v1379 = vld [vmem:[#allocation13 + $0xf0] sm:$0xff]
    %v1380 = vld [vmem:[#allocation13 + $0xf8] sm:$0xff]
    %v1381 = vld [vmem:[%s10] sm:$0x3]
    %v1383 = vlaneseq
    %v1384 = vshrl.u32 %v1383, 7
    %v1385 = vsub.s32 0, %v1384
    %v1386 = vrot.slane %v1381, %v1385
    %v1387 = vlaneseq
    %v1388 = vshrl.u32 %v1387, 7
    %v1389 = vsub.s32 1, %v1388
    %v1390 = vrot.slane %v1381, %v1389
    %v1425 = vunpack.c.l.b16 %v1349
    %v1426 = vunpack.c.h.b16 %v1349
    %v1427 = vunpack.c.l.b16 %v1350
    %v1428 = vunpack.c.h.b16 %v1350
    %v1429 = vunpack.c.l.b16 %v1351
    %v1430 = vunpack.c.h.b16 %v1351
    %v1431 = vunpack.c.l.b16 %v1352
    %v1432 = vunpack.c.h.b16 %v1352
    %v1433 = vunpack.c.l.b16 %v1353
    %v1434 = vunpack.c.h.b16 %v1353
    %v1435 = vunpack.c.l.b16 %v1354
    %v1436 = vunpack.c.h.b16 %v1354
    %v1437 = vunpack.c.l.b16 %v1355
    %v1438 = vunpack.c.h.b16 %v1355
    %v1439 = vunpack.c.l.b16 %v1356
    %v1440 = vunpack.c.h.b16 %v1356
    %v1441 = vunpack.c.l.b16 %v1357
    %v1442 = vunpack.c.h.b16 %v1357
    %v1443 = vunpack.c.l.b16 %v1358
    %v1444 = vunpack.c.h.b16 %v1358
    %v1445 = vunpack.c.l.b16 %v1359
    %v1446 = vunpack.c.h.b16 %v1359
    %v1447 = vunpack.c.l.b16 %v1360
    %v1448 = vunpack.c.h.b16 %v1360
    %v1449 = vunpack.c.l.b16 %v1361
    %v1450 = vunpack.c.h.b16 %v1361
    %v1451 = vunpack.c.l.b16 %v1362
    %v1452 = vunpack.c.h.b16 %v1362
    %v1453 = vunpack.c.l.b16 %v1363
    %v1454 = vunpack.c.h.b16 %v1363
    %v1455 = vunpack.c.l.b16 %v1364
    %v1456 = vunpack.c.h.b16 %v1364
    %v1457 = vunpack.c.l.b16 %v1365
    %v1458 = vunpack.c.h.b16 %v1365
    %v1459 = vunpack.c.l.b16 %v1366
    %v1460 = vunpack.c.h.b16 %v1366
    %v1461 = vunpack.c.l.b16 %v1367
    %v1462 = vunpack.c.h.b16 %v1367
    %v1463 = vunpack.c.l.b16 %v1368
    %v1464 = vunpack.c.h.b16 %v1368
    %v1465 = vunpack.c.l.b16 %v1369
    %v1466 = vunpack.c.h.b16 %v1369
    %v1467 = vunpack.c.l.b16 %v1370
    %v1468 = vunpack.c.h.b16 %v1370
    %v1469 = vunpack.c.l.b16 %v1371
    %v1470 = vunpack.c.h.b16 %v1371
    %v1471 = vunpack.c.l.b16 %v1372
    %v1472 = vunpack.c.h.b16 %v1372
    %v1473 = vunpack.c.l.b16 %v1373
    %v1474 = vunpack.c.h.b16 %v1373
    %v1475 = vunpack.c.l.b16 %v1374
    %v1476 = vunpack.c.h.b16 %v1374
    %v1477 = vunpack.c.l.b16 %v1375
    %v1478 = vunpack.c.h.b16 %v1375
    %v1479 = vunpack.c.l.b16 %v1376
    %v1480 = vunpack.c.h.b16 %v1376
    %v1481 = vunpack.c.l.b16 %v1377
    %v1482 = vunpack.c.h.b16 %v1377
    %v1483 = vunpack.c.l.b16 %v1378
    %v1484 = vunpack.c.h.b16 %v1378
    %v1485 = vunpack.c.l.b16 %v1379
    %v1486 = vunpack.c.h.b16 %v1379
    %v1487 = vunpack.c.l.b16 %v1380
    %v1488 = vunpack.c.h.b16 %v1380
    %v1489 = vpack.c.b16 %v1427, %v1425
    %v1490 = vpack.c.b16 %v1428, %v1426
    %v1491 = vpack.c.b16 %v1431, %v1429
    %v1492 = vpack.c.b16 %v1432, %v1430
    %v1493 = vpack.c.b16 %v1435, %v1433
    %v1494 = vpack.c.b16 %v1436, %v1434
    %v1495 = vpack.c.b16 %v1439, %v1437
    %v1496 = vpack.c.b16 %v1440, %v1438
    %v1497 = vpack.c.b16 %v1443, %v1441
    %v1498 = vpack.c.b16 %v1444, %v1442
    %v1499 = vpack.c.b16 %v1447, %v1445
    %v1500 = vpack.c.b16 %v1448, %v1446
    %v1501 = vpack.c.b16 %v1451, %v1449
    %v1502 = vpack.c.b16 %v1452, %v1450
    %v1503 = vpack.c.b16 %v1455, %v1453
    %v1504 = vpack.c.b16 %v1456, %v1454
    %v1505 = vpack.c.b16 %v1459, %v1457
    %v1506 = vpack.c.b16 %v1460, %v1458
    %v1507 = vpack.c.b16 %v1463, %v1461
    %v1508 = vpack.c.b16 %v1464, %v1462
    %v1509 = vpack.c.b16 %v1467, %v1465
    %v1510 = vpack.c.b16 %v1468, %v1466
    %v1511 = vpack.c.b16 %v1471, %v1469
    %v1512 = vpack.c.b16 %v1472, %v1470
    %v1513 = vpack.c.b16 %v1475, %v1473
    %v1514 = vpack.c.b16 %v1476, %v1474
    %v1515 = vpack.c.b16 %v1479, %v1477
    %v1516 = vpack.c.b16 %v1480, %v1478
    %v1517 = vpack.c.b16 %v1483, %v1481
    %v1518 = vpack.c.b16 %v1484, %v1482
    %v1519 = vpack.c.b16 %v1487, %v1485
    %v1520 = vpack.c.b16 %v1488, %v1486
    %1553 = vmatprep.subr.bf16.mxu0 %v1490
    %1554 = vmatpush1.bf16.msra.mxu0 %v1489
    %1555 = vmatprep.subr.bf16.mxu0 %v1492
    %1556 = vmatpush1.bf16.msra.mxu0 %v1491
    %1557 = vmatprep.subr.bf16.mxu0 %v1494
    %1558 = vmatpush1.bf16.msra.mxu0 %v1493
    %1559 = vmatprep.subr.bf16.mxu0 %v1496
    %1560 = vmatpush1.bf16.msra.mxu0 %v1495
    %1561 = vmatprep.subr.bf16.mxu0 %v1498
    %1562 = vmatpush1.bf16.msra.mxu0 %v1497
    %1563 = vmatprep.subr.bf16.mxu0 %v1500
    %1564 = vmatpush1.bf16.msra.mxu0 %v1499
    %1565 = vmatprep.subr.bf16.mxu0 %v1502
    %1566 = vmatpush1.bf16.msra.mxu0 %v1501
    %1567 = vmatprep.subr.bf16.mxu0 %v1504
    %1568 = vmatpush1.bf16.msra.mxu0 %v1503
    %1569 = vmatprep.subr.bf16.mxu0 %v1506
    %1570 = vmatpush1.bf16.msra.mxu0 %v1505
    %1571 = vmatprep.subr.bf16.mxu0 %v1508
    %1572 = vmatpush1.bf16.msra.mxu0 %v1507
    %1573 = vmatprep.subr.bf16.mxu0 %v1510
    %1574 = vmatpush1.bf16.msra.mxu0 %v1509
    %1575 = vmatprep.subr.bf16.mxu0 %v1512
    %1576 = vmatpush1.bf16.msra.mxu0 %v1511
    %1577 = vmatprep.subr.bf16.mxu0 %v1514
    %1578 = vmatpush1.bf16.msra.mxu0 %v1513
    %1579 = vmatprep.subr.bf16.mxu0 %v1516
    %1580 = vmatpush1.bf16.msra.mxu0 %v1515
    %1581 = vmatprep.subr.bf16.mxu0 %v1518
    %1582 = vmatpush1.bf16.msra.mxu0 %v1517
    %1583 = vmatprep.subr.bf16.mxu0 %v1520
    %1584 = vmatpush1.bf16.msra.mxu0 %v1519
    %1585 = vmatprep.mubr.bf16.mxu0 %v1348
    %1586 = vmatmul.mubr.bf16.gmra.mrb[0].mxu0 %v1347
    %v1587 = vpop.f32.mrb[0].mxu0
    %v1588 = vadd.f32 %v1386, %v1587
    %v1589 = vpop.f32.mrb[0].mxu0
    %v1590 = vadd.f32 %v1390, %v1589
    %v1591 = vpop.f32.mrb[0].mxu0
    %v1592 = vpop.f32.mrb[0].mxu0
    %1593 = vdwg.mxu0
    %v1594 = vadd.f32 %v137, %v1588
    %v1595 = vadd.f32 %v138, %v1590
    %v1596 = vld [vmem:[%s11] sm:$0x3]
    %v1597 = vld [vmem:[%s12] sm:$0x3]
    %v1598 = vadd.f32 %v1594, %v1595
    %1599 = vadd.xlane.f32.xlu0 %v1598
    %v1600 = vpop.xlane.xlu0 %1599
    %v1601 = vrcp.pop 256.0
    %v1602 = vmul.f32 %v1600, %v1601
    %v1603 = vsub.f32 %v1594, %v1602
    %v1604 = vsub.f32 %v1595, %v1602
    %v1605 = vmul.f32 %v1603, %v1603
    %v1606 = vmul.f32 %v1604, %v1604
    %v1607 = vadd.f32 %v1605, %v1606
    %1608 = vadd.xlane.f32.xlu0 %v1607
    %v1609 = vpop.xlane.xlu0 %1608
    %v1610 = vmul.f32 %v1609, %v1601
    %v1611 = vadd.f32 %v1610, 1e-05
    %v1612 = vrsqrt.pop %v1611
    %v1613 = vmul.f32 %v1603, %v1612
    %v1614 = vmul.f32 %v1604, %v1612
    %v1616 = vlaneseq
    %v1617 = vshrl.u32 %v1616, 7
    %v1618 = vsub.s32 0, %v1617
    %v1619 = vrot.slane %v1596, %v1618
    %v1620 = vlaneseq
    %v1621 = vshrl.u32 %v1620, 7
    %v1622 = vsub.s32 1, %v1621
    %v1623 = vrot.slane %v1596, %v1622
    %v1626 = vmul.f32 %v1613, %v1619
    %v1627 = vmul.f32 %v1614, %v1623
    %v1629 = vlaneseq
    %v1630 = vshrl.u32 %v1629, 7
    %v1631 = vsub.s32 0, %v1630
    %v1632 = vrot.slane %v1597, %v1631
    %v1633 = vlaneseq
    %v1634 = vshrl.u32 %v1633, 7
    %v1635 = vsub.s32 1, %v1634
    %v1636 = vrot.slane %v1597, %v1635
    %v1639 = vadd.f32 %v1626, %v1632
    %v1640 = vadd.f32 %v1627, %v1636
    %1641 = vst [vmem:[#allocation14] sm:$0xff] %v1639
    %1642 = vst [vmem:[#allocation14 + $0x8] sm:$0xff] %v1640
    // Predicated region
    $region82: #{tpu_custom_call.1} parent=1 // pred_check
      _
    $region83: #{tpu_custom_call.1} parent=1 // pred_check_branch
      %1644 = sbr.rel (0) target = $region85
    $region84: #{tpu_custom_call.1} parent=1 // pred_region
      %s1646 = ssub.s32 256, 256
      %1647 = vsyncadd [#allocation4], %s1646
      %s1649 = sshll.u32 [#allocation14], 4
      %s1650 = int_to_ptr.vmem [resolvable:$true] %s1649
      %1652 = dma.vmem_to_hbm [thread:$0]  %s1650, 256, %s13, [#allocation4]
    $region85: #{tpu_custom_call.1} parent=1 // pred_fallthru
      _
    // Predicated region
    $region86: #{tpu_custom_call.1} parent=1 // pred_check
      _
    $region87: #{tpu_custom_call.1} parent=1 // pred_check_branch
      %1654 = sbr.rel (0) target = $region89
    $region88: #{tpu_custom_call.1} parent=1 // pred_region
      _
    $region89: #{tpu_custom_call.1} parent=1 // pred_fallthru
      _
    // Predicated region
    $region90: #{tpu_custom_call.1} parent=1 // pred_check
      _
    $region91: #{tpu_custom_call.1} parent=1 // pred_check_branch
      %1656 = sbr.rel (0) target = $region93
    $region92: #{tpu_custom_call.1} parent=1 // pred_region
      %1657 = dma.done [#allocation4], 256
    $region93: #{tpu_custom_call.1} parent=1 // pred_fallthru
      _
    // Predicated region
    $region94: #{tpu_custom_call.1} parent=1 // pred_check
      _
    $region95: #{tpu_custom_call.1} parent=1 // pred_check_branch
      %1659 = sbr.rel (0) target = $region97
    $region96: #{tpu_custom_call.1} parent=1 // pred_region
      _
    $region97: #{tpu_custom_call.1} parent=1 // pred_fallthru
      _
    %1660 = vsyncpa [#allocation3], 1
    %1661 = vsyncpa [#allocation6], 1
    %1662 = vsyncpa [#allocation9], 1
    %1663 = vsyncpa [#allocation12], 1
    %1664 = vsyncpa [#allocation4], 1

</llo_original>
